<compile_context>
chip_gen: v7x
topology: tpu7x:2x2x1
jax: 0.10.0
libtpu: 0.0.40
codegen_flags: <defaults>
</compile_context>

<pallas_src>
import numpy as np
import jax
import jax.numpy as jnp
from jax.experimental import pallas as pl
from jax.experimental.pallas import tpu as pltpu


# ----------------------------------------------------------------------------
# Fused sampler kernel: the whole num_steps diffusion loop on one [B*C, T] tile.
# ----------------------------------------------------------------------------
def make_sampler_kernel(num_steps, c1, c2, B, C):
    """c1/c2: Python float lists of length num_steps (folded rotation, baked as consts)."""

    def kernel(xn_ref, cond_ref, w1a_ref, w1b_ref, w2_ref, bias1_ref, b2_ref, out_ref):
        xn = xn_ref[...]          # [B*C, T]  noisy audio, batch packed into sublanes
        cond = cond_ref[...]      # [B*C, T]  style/conditioning audio (loop-invariant)
        b2b = b2_ref[...]         # [B*C, T]  output bias, pre-broadcast on host (hoisted load)

        # ------------------------------------------------------------------
        # Loop-invariant conditioning path of net(cat([x_noisy, x]), sigma):
        #   W1 @ cat(xn, cond) == W1a @ xn + W1b @ cond  -> second term hoisted.
        # K = C = 4 contraction as C broadcast FMAs on the VPU (no MXU).
        # w1b_ref[c] is the dense lane-broadcast [H, T] column c of W1b.
        # ------------------------------------------------------------------
        h_cond = []
        for b in range(B):
            acc = w1b_ref[0] * cond[b * C:b * C + 1, :]            # [H,T] * [1,T] -> [H,T]
            for c in range(1, C):
                acc = acc + w1b_ref[c] * cond[b * C + c:b * C + c + 1, :]
            h_cond.append(acc)                                      # [H, T] per batch

        # ------------------------------------------------------------------
        # Static unroll over the (small) number of sampling steps; c1/c2 are
        # compile-time constants. (Switch to lax.fori_loop for >= ~16 steps.)
        # ------------------------------------------------------------------
        for i in range(num_steps):
            bias_i = bias1_ref[i]                                   # [H, T] dense load
            v_rows = []
            for b in range(B):
                # First layer: h_b = W1a @ xn_b + W1b @ cond_b + bias_i  (VPU FMAs).
                h_b = h_cond[b] + bias_i
                for c in range(C):
                    h_b = h_b + w1a_ref[c] * xn[b * C + c:b * C + c + 1, :]
                h_b = jax.nn.gelu(h_b, approximate=True)            # EUP tanh path
                # Second layer: v_b[c, :] = sum_h W2[c, h] * h_b[h, :]
                # elementwise multiply (VPU) + cross-sublane reduce (XLU); no MXU.
                for c in range(C):
                    v_rows.append(jnp.sum(w2_ref[c] * h_b, axis=0, keepdims=True))
            v = jnp.concatenate(v_rows, axis=0)                     # [B*C, T]

            # Folded 2x2 rotation:
            #   a_{i+1}*(a_i*xn - b_i*v) + b_{i+1}*(b_i*xn + a_i*v) == c1*xn + c2*v
            xn = c1[i] * xn + c2[i] * (v + b2b)

        out_ref[...] = xn

    return kernel


# ----------------------------------------------------------------------------
# Wrapper: StyleVSampler.forward
# ----------------------------------------------------------------------------
def style_v_sampler_forward(x_noisy, x, params, num_steps):
    """x_noisy, x: [B, C, T] (PyTorch NCL audio). Returns denoised [B, C, T]."""
    B, C, T = x_noisy.shape
    H = params["w1a"].shape[0]

    # LinearSchedule(start=1.0, end=0.0) and alpha/beta -> folded per-step rotation.
    sig = np.linspace(1.0, 0.0, num_steps + 1)
    alphas = np.cos(sig * np.pi / 2.0)
    betas = np.sin(sig * np.pi / 2.0)
    c1 = [float(alphas[i + 1] * alphas[i] + betas[i + 1] * betas[i]) for i in range(num_steps)]
    c2 = [float(betas[i + 1] * alphas[i] - alphas[i + 1] * betas[i]) for i in range(num_steps)]

    # Fused per-step first-layer bias (b1 + bt + sigma_i*wt), pre-broadcast lane-dense.
    sig_steps = jnp.asarray(sig[:num_steps], jnp.float32)                        # [S]
    bias1 = (params["b1"] + params["bt"])[None, :] \
        + sig_steps[:, None] * params["wt"][None, :]                             # [S, H]
    bias1_b = jnp.broadcast_to(bias1[:, :, None], (num_steps, H, T))             # [S, H, T]

    # Weights pre-broadcast along T on the host (no in-kernel lane-broadcasts):
    #   w1*_b[c] = column c of W1* as a dense [H, T] tile,
    #   w2_b[c]  = row c of W2   as a dense [H, T] tile.
    w1a_b = jnp.broadcast_to(jnp.transpose(params["w1a"])[:, :, None], (C, H, T))
    w1b_b = jnp.broadcast_to(jnp.transpose(params["w1b"])[:, :, None], (C, H, T))
    w2_b = jnp.broadcast_to(params["w2"][:, :, None], (C, H, T))
    b2_b = jnp.broadcast_to(jnp.tile(params["b2"], B)[:, None], (B * C, T))      # [B*C, T]

    # Batch packed into sublanes: B*C = 8 rows -> exactly one f32 vreg at T=128.
    xn_flat = x_noisy.astype(jnp.float32).reshape(B * C, T)
    cond_flat = x.astype(jnp.float32).reshape(B * C, T)

    kernel = make_sampler_kernel(num_steps, c1, c2, B, C)

    # No grid: whole problem (~300 KB) is VMEM-resident; the full sampler loop runs
    # inside a single kernel invocation. Blocks equal the full array shapes.
    vmem_spec = pl.BlockSpec(memory_space=pltpu.MemorySpace.VMEM)

    out_flat = pl.pallas_call(
        kernel,
        out_shape=jax.ShapeDtypeStruct((B * C, T), jnp.float32),
        in_specs=[vmem_spec] * 7,
        out_specs=vmem_spec,
    )(xn_flat, cond_flat, w1a_b, w1b_b, w2_b, bias1_b, b2_b)

    return out_flat.reshape(B, C, T)


# ----------------------------------------------------------------------------
# Pure-JAX reference (mirrors the original x_pred / noise_pred algebra)
# ----------------------------------------------------------------------------
def style_v_sampler_reference(x_noisy, x, params, num_steps):
    hp = jax.lax.Precision.HIGHEST
    sig = np.linspace(1.0, 0.0, num_steps + 1)
    alphas = np.cos(sig * np.pi / 2.0)
    betas = np.sin(sig * np.pi / 2.0)
    xn = x_noisy.astype(jnp.float32)
    cond = x.astype(jnp.float32)
    for i in range(num_steps):
        bias = (params["b1"] + params["bt"] + float(sig[i]) * params["wt"])[None, :, None]
        h = (jnp.einsum("hc,bct->bht", params["w1a"], xn, precision=hp)
             + jnp.einsum("hc,bct->bht", params["w1b"], cond, precision=hp)
             + bias)
        h = jax.nn.gelu(h, approximate=True)
        v = jnp.einsum("ch,bht->bct", params["w2"], h, precision=hp) \
            + params["b2"][None, :, None]
        a_i, b_i = float(alphas[i]), float(betas[i])
        a_n, b_n = float(alphas[i + 1]), float(betas[i + 1])
        x_pred = a_i * xn - b_i * v
        noise_pred = b_i * xn + a_i * v
        xn = a_n * x_pred + b_n * noise_pred
    return xn


# ----------------------------------------------------------------------------
# Deterministic synthetic net parameters (channel-first layout)
# ----------------------------------------------------------------------------
def init_params(key, channels, hidden):
    ks = jax.random.split(key, 4)
    s_in = 1.0 / np.sqrt(2 * channels)
    s_out = 1.0 / np.sqrt(hidden)
    return {
        "w1a": jax.random.normal(ks[0], (hidden, channels), jnp.float32) * s_in,  # on x_noisy
        "w1b": jax.random.normal(ks[1], (hidden, channels), jnp.float32) * s_in,  # on style x
        "b1":  jnp.zeros((hidden,), jnp.float32),
        "wt":  jax.random.normal(ks[2], (hidden,), jnp.float32) * 0.02,           # sigma embed
        "bt":  jnp.zeros((hidden,), jnp.float32),
        "w2":  jax.random.normal(ks[3], (channels, hidden), jnp.float32) * s_out,
        "b2":  jnp.zeros((channels,), jnp.float32),
    }


if __name__ == "__main__":
    B, C, T, H, NUM_STEPS = 2, 4, 128, 32, 4
    key = jax.random.PRNGKey(0)
    k_xn, k_x, k_p = jax.random.split(key, 3)

    x_noisy = jax.random.normal(k_xn, (B, C, T), jnp.float32)
    x_style = jax.random.normal(k_x, (B, C, T), jnp.float32)
    params = init_params(k_p, C, H)

    out = style_v_sampler_forward(x_noisy, x_style, params, num_steps=NUM_STEPS)
    out = jax.block_until_ready(out)

    assert out.shape == (B, C, T)
    assert bool(jnp.all(jnp.isfinite(out)))

    ref = jax.block_until_ready(
        style_v_sampler_reference(x_noisy, x_style, params, num_steps=NUM_STEPS))
    # All contractions now run as exact f32 VPU FMAs / sublane reductions, so the
    # tolerance is 20x tighter than the previous MXU-based version.
    assert bool(jnp.allclose(out, ref, atol=1e-3, rtol=1e-3)), \
        float(jnp.max(jnp.abs(out - ref)))

    print("KERNEL_OK")
</pallas_src>

<mosaic_0001>
module attributes {stable_mosaic.version = 11 : i64} {
  func.func @kernel(%arg0: memref<8x128xf32, #tpu.memory_space<vmem>>, %arg1: memref<8x128xf32, #tpu.memory_space<vmem>>, %arg2: memref<4x32x128xf32, #tpu.memory_space<vmem>>, %arg3: memref<4x32x128xf32, #tpu.memory_space<vmem>>, %arg4: memref<4x32x128xf32, #tpu.memory_space<vmem>>, %arg5: memref<4x32x128xf32, #tpu.memory_space<vmem>>, %arg6: memref<8x128xf32, #tpu.memory_space<vmem>>, %arg7: memref<8x128xf32, #tpu.memory_space<vmem>>) attributes {dimension_semantics = [], scalar_prefetch = 0 : i64, scratch_operands = 0 : i64, tpu.core_type = #tpu.core_type<tc>} {
    %c0 = arith.constant 0 : index
    %c0_0 = arith.constant 0 : index
    %0 = vector.load %arg0[%c0, %c0_0] : memref<8x128xf32, #tpu.memory_space<vmem>>, vector<8x128xf32>
    %c0_1 = arith.constant 0 : index
    %c0_2 = arith.constant 0 : index
    %1 = vector.load %arg1[%c0_1, %c0_2] : memref<8x128xf32, #tpu.memory_space<vmem>>, vector<8x128xf32>
    %c0_3 = arith.constant 0 : index
    %c0_4 = arith.constant 0 : index
    %2 = vector.load %arg6[%c0_3, %c0_4] : memref<8x128xf32, #tpu.memory_space<vmem>>, vector<8x128xf32>
    %c0_5 = arith.constant 0 : index
    %c0_6 = arith.constant 0 : index
    %c0_7 = arith.constant 0 : index
    %3 = vector.load %arg3[%c0_5, %c0_6, %c0_7] : memref<4x32x128xf32, #tpu.memory_space<vmem>>, vector<1x32x128xf32>
    %4 = vector.shape_cast %3 : vector<1x32x128xf32> to vector<32x128xf32>
    %5 = vector.extract_strided_slice %1 {offsets = [0, 0], sizes = [1, 128], strides = [1, 1]} : vector<8x128xf32> to vector<1x128xf32>
    %6 = vector.broadcast %5 : vector<1x128xf32> to vector<32x128xf32>
    %7 = arith.mulf %4, %6 : vector<32x128xf32>
    %c1 = arith.constant 1 : index
    %c0_8 = arith.constant 0 : index
    %c0_9 = arith.constant 0 : index
    %8 = vector.load %arg3[%c1, %c0_8, %c0_9] : memref<4x32x128xf32, #tpu.memory_space<vmem>>, vector<1x32x128xf32>
    %9 = vector.shape_cast %8 : vector<1x32x128xf32> to vector<32x128xf32>
    %10 = vector.extract_strided_slice %1 {offsets = [1, 0], sizes = [1, 128], strides = [1, 1]} : vector<8x128xf32> to vector<1x128xf32>
    %11 = vector.broadcast %10 : vector<1x128xf32> to vector<32x128xf32>
    %12 = arith.mulf %9, %11 : vector<32x128xf32>
    %13 = arith.addf %7, %12 : vector<32x128xf32>
    %c2 = arith.constant 2 : index
    %c0_10 = arith.constant 0 : index
    %c0_11 = arith.constant 0 : index
    %14 = vector.load %arg3[%c2, %c0_10, %c0_11] : memref<4x32x128xf32, #tpu.memory_space<vmem>>, vector<1x32x128xf32>
    %15 = vector.shape_cast %14 : vector<1x32x128xf32> to vector<32x128xf32>
    %16 = vector.extract_strided_slice %1 {offsets = [2, 0], sizes = [1, 128], strides = [1, 1]} : vector<8x128xf32> to vector<1x128xf32>
    %17 = vector.broadcast %16 : vector<1x128xf32> to vector<32x128xf32>
    %18 = arith.mulf %15, %17 : vector<32x128xf32>
    %19 = arith.addf %13, %18 : vector<32x128xf32>
    %c3 = arith.constant 3 : index
    %c0_12 = arith.constant 0 : index
    %c0_13 = arith.constant 0 : index
    %20 = vector.load %arg3[%c3, %c0_12, %c0_13] : memref<4x32x128xf32, #tpu.memory_space<vmem>>, vector<1x32x128xf32>
    %21 = vector.shape_cast %20 : vector<1x32x128xf32> to vector<32x128xf32>
    %22 = vector.extract_strided_slice %1 {offsets = [3, 0], sizes = [1, 128], strides = [1, 1]} : vector<8x128xf32> to vector<1x128xf32>
    %23 = vector.broadcast %22 : vector<1x128xf32> to vector<32x128xf32>
    %24 = arith.mulf %21, %23 : vector<32x128xf32>
    %25 = arith.addf %19, %24 : vector<32x128xf32>
    %c0_14 = arith.constant 0 : index
    %c0_15 = arith.constant 0 : index
    %c0_16 = arith.constant 0 : index
    %26 = vector.load %arg3[%c0_14, %c0_15, %c0_16] : memref<4x32x128xf32, #tpu.memory_space<vmem>>, vector<1x32x128xf32>
    %27 = vector.shape_cast %26 : vector<1x32x128xf32> to vector<32x128xf32>
    %28 = vector.extract_strided_slice %1 {offsets = [4, 0], sizes = [1, 128], strides = [1, 1]} : vector<8x128xf32> to vector<1x128xf32>
    %29 = vector.broadcast %28 : vector<1x128xf32> to vector<32x128xf32>
    %30 = arith.mulf %27, %29 : vector<32x128xf32>
    %c1_17 = arith.constant 1 : index
    %c0_18 = arith.constant 0 : index
    %c0_19 = arith.constant 0 : index
    %31 = vector.load %arg3[%c1_17, %c0_18, %c0_19] : memref<4x32x128xf32, #tpu.memory_space<vmem>>, vector<1x32x128xf32>
    %32 = vector.shape_cast %31 : vector<1x32x128xf32> to vector<32x128xf32>
    %33 = vector.extract_strided_slice %1 {offsets = [5, 0], sizes = [1, 128], strides = [1, 1]} : vector<8x128xf32> to vector<1x128xf32>
    %34 = vector.broadcast %33 : vector<1x128xf32> to vector<32x128xf32>
    %35 = arith.mulf %32, %34 : vector<32x128xf32>
    %36 = arith.addf %30, %35 : vector<32x128xf32>
    %c2_20 = arith.constant 2 : index
    %c0_21 = arith.constant 0 : index
    %c0_22 = arith.constant 0 : index
    %37 = vector.load %arg3[%c2_20, %c0_21, %c0_22] : memref<4x32x128xf32, #tpu.memory_space<vmem>>, vector<1x32x128xf32>
    %38 = vector.shape_cast %37 : vector<1x32x128xf32> to vector<32x128xf32>
    %39 = vector.extract_strided_slice %1 {offsets = [6, 0], sizes = [1, 128], strides = [1, 1]} : vector<8x128xf32> to vector<1x128xf32>
    %40 = vector.broadcast %39 : vector<1x128xf32> to vector<32x128xf32>
    %41 = arith.mulf %38, %40 : vector<32x128xf32>
    %42 = arith.addf %36, %41 : vector<32x128xf32>
    %c3_23 = arith.constant 3 : index
    %c0_24 = arith.constant 0 : index
    %c0_25 = arith.constant 0 : index
    %43 = vector.load %arg3[%c3_23, %c0_24, %c0_25] : memref<4x32x128xf32, #tpu.memory_space<vmem>>, vector<1x32x128xf32>
    %44 = vector.shape_cast %43 : vector<1x32x128xf32> to vector<32x128xf32>
    %45 = vector.extract_strided_slice %1 {offsets = [7, 0], sizes = [1, 128], strides = [1, 1]} : vector<8x128xf32> to vector<1x128xf32>
    %46 = vector.broadcast %45 : vector<1x128xf32> to vector<32x128xf32>
    %47 = arith.mulf %44, %46 : vector<32x128xf32>
    %48 = arith.addf %42, %47 : vector<32x128xf32>
    %c0_26 = arith.constant 0 : index
    %c0_27 = arith.constant 0 : index
    %c0_28 = arith.constant 0 : index
    %49 = vector.load %arg5[%c0_26, %c0_27, %c0_28] : memref<4x32x128xf32, #tpu.memory_space<vmem>>, vector<1x32x128xf32>
    %50 = vector.shape_cast %49 : vector<1x32x128xf32> to vector<32x128xf32>
    %51 = arith.addf %25, %50 : vector<32x128xf32>
    %c0_29 = arith.constant 0 : index
    %c0_30 = arith.constant 0 : index
    %c0_31 = arith.constant 0 : index
    %52 = vector.load %arg2[%c0_29, %c0_30, %c0_31] : memref<4x32x128xf32, #tpu.memory_space<vmem>>, vector<1x32x128xf32>
    %53 = vector.shape_cast %52 : vector<1x32x128xf32> to vector<32x128xf32>
    %54 = vector.extract_strided_slice %0 {offsets = [0, 0], sizes = [1, 128], strides = [1, 1]} : vector<8x128xf32> to vector<1x128xf32>
    %55 = vector.broadcast %54 : vector<1x128xf32> to vector<32x128xf32>
    %56 = arith.mulf %53, %55 : vector<32x128xf32>
    %57 = arith.addf %51, %56 : vector<32x128xf32>
    %c1_32 = arith.constant 1 : index
    %c0_33 = arith.constant 0 : index
    %c0_34 = arith.constant 0 : index
    %58 = vector.load %arg2[%c1_32, %c0_33, %c0_34] : memref<4x32x128xf32, #tpu.memory_space<vmem>>, vector<1x32x128xf32>
    %59 = vector.shape_cast %58 : vector<1x32x128xf32> to vector<32x128xf32>
    %60 = vector.extract_strided_slice %0 {offsets = [1, 0], sizes = [1, 128], strides = [1, 1]} : vector<8x128xf32> to vector<1x128xf32>
    %61 = vector.broadcast %60 : vector<1x128xf32> to vector<32x128xf32>
    %62 = arith.mulf %59, %61 : vector<32x128xf32>
    %63 = arith.addf %57, %62 : vector<32x128xf32>
    %c2_35 = arith.constant 2 : index
    %c0_36 = arith.constant 0 : index
    %c0_37 = arith.constant 0 : index
    %64 = vector.load %arg2[%c2_35, %c0_36, %c0_37] : memref<4x32x128xf32, #tpu.memory_space<vmem>>, vector<1x32x128xf32>
    %65 = vector.shape_cast %64 : vector<1x32x128xf32> to vector<32x128xf32>
    %66 = vector.extract_strided_slice %0 {offsets = [2, 0], sizes = [1, 128], strides = [1, 1]} : vector<8x128xf32> to vector<1x128xf32>
    %67 = vector.broadcast %66 : vector<1x128xf32> to vector<32x128xf32>
    %68 = arith.mulf %65, %67 : vector<32x128xf32>
    %69 = arith.addf %63, %68 : vector<32x128xf32>
    %c3_38 = arith.constant 3 : index
    %c0_39 = arith.constant 0 : index
    %c0_40 = arith.constant 0 : index
    %70 = vector.load %arg2[%c3_38, %c0_39, %c0_40] : memref<4x32x128xf32, #tpu.memory_space<vmem>>, vector<1x32x128xf32>
    %71 = vector.shape_cast %70 : vector<1x32x128xf32> to vector<32x128xf32>
    %72 = vector.extract_strided_slice %0 {offsets = [3, 0], sizes = [1, 128], strides = [1, 1]} : vector<8x128xf32> to vector<1x128xf32>
    %73 = vector.broadcast %72 : vector<1x128xf32> to vector<32x128xf32>
    %74 = arith.mulf %71, %73 : vector<32x128xf32>
    %75 = arith.addf %69, %74 : vector<32x128xf32>
    %76 = arith.mulf %75, %75 : vector<32x128xf32>
    %77 = arith.mulf %75, %76 : vector<32x128xf32>
    %cst = arith.constant 4.471500e-02 : f32
    %78 = vector.broadcast %cst : f32 to vector<32x128xf32>
    %79 = arith.mulf %78, %77 : vector<32x128xf32>
    %80 = arith.addf %75, %79 : vector<32x128xf32>
    %cst_41 = arith.constant 0.797884583 : f32
    %81 = vector.broadcast %cst_41 : f32 to vector<32x128xf32>
    %82 = arith.mulf %81, %80 : vector<32x128xf32>
    %83 = math.tanh %82 : vector<32x128xf32>
    %cst_42 = arith.constant 1.000000e+00 : f32
    %84 = vector.broadcast %cst_42 : f32 to vector<32x128xf32>
    %85 = arith.addf %84, %83 : vector<32x128xf32>
    %cst_43 = arith.constant 5.000000e-01 : f32
    %86 = vector.broadcast %cst_43 : f32 to vector<32x128xf32>
    %87 = arith.mulf %86, %85 : vector<32x128xf32>
    %88 = arith.mulf %75, %87 : vector<32x128xf32>
    %c0_44 = arith.constant 0 : index
    %c0_45 = arith.constant 0 : index
    %c0_46 = arith.constant 0 : index
    %89 = vector.load %arg4[%c0_44, %c0_45, %c0_46] : memref<4x32x128xf32, #tpu.memory_space<vmem>>, vector<1x32x128xf32>
    %90 = vector.shape_cast %89 : vector<1x32x128xf32> to vector<32x128xf32>
    %91 = arith.mulf %90, %88 : vector<32x128xf32>
    %cst_47 = arith.constant dense<0.000000e+00> : vector<128xf32>
    %92 = vector.multi_reduction <add>, %91, %cst_47 [0] : vector<32x128xf32> to vector<128xf32>
    %93 = vector.shape_cast %92 : vector<128xf32> to vector<1x128xf32>
    %c1_48 = arith.constant 1 : index
    %c0_49 = arith.constant 0 : index
    %c0_50 = arith.constant 0 : index
    %94 = vector.load %arg4[%c1_48, %c0_49, %c0_50] : memref<4x32x128xf32, #tpu.memory_space<vmem>>, vector<1x32x128xf32>
    %95 = vector.shape_cast %94 : vector<1x32x128xf32> to vector<32x128xf32>
    %96 = arith.mulf %95, %88 : vector<32x128xf32>
    %cst_51 = arith.constant dense<0.000000e+00> : vector<128xf32>
    %97 = vector.multi_reduction <add>, %96, %cst_51 [0] : vector<32x128xf32> to vector<128xf32>
    %98 = vector.shape_cast %97 : vector<128xf32> to vector<1x128xf32>
    %c2_52 = arith.constant 2 : index
    %c0_53 = arith.constant 0 : index
    %c0_54 = arith.constant 0 : index
    %99 = vector.load %arg4[%c2_52, %c0_53, %c0_54] : memref<4x32x128xf32, #tpu.memory_space<vmem>>, vector<1x32x128xf32>
    %100 = vector.shape_cast %99 : vector<1x32x128xf32> to vector<32x128xf32>
    %101 = arith.mulf %100, %88 : vector<32x128xf32>
    %cst_55 = arith.constant dense<0.000000e+00> : vector<128xf32>
    %102 = vector.multi_reduction <add>, %101, %cst_55 [0] : vector<32x128xf32> to vector<128xf32>
    %103 = vector.shape_cast %102 : vector<128xf32> to vector<1x128xf32>
    %c3_56 = arith.constant 3 : index
    %c0_57 = arith.constant 0 : index
    %c0_58 = arith.constant 0 : index
    %104 = vector.load %arg4[%c3_56, %c0_57, %c0_58] : memref<4x32x128xf32, #tpu.memory_space<vmem>>, vector<1x32x128xf32>
    %105 = vector.shape_cast %104 : vector<1x32x128xf32> to vector<32x128xf32>
    %106 = arith.mulf %105, %88 : vector<32x128xf32>
    %cst_59 = arith.constant dense<0.000000e+00> : vector<128xf32>
    %107 = vector.multi_reduction <add>, %106, %cst_59 [0] : vector<32x128xf32> to vector<128xf32>
    %108 = vector.shape_cast %107 : vector<128xf32> to vector<1x128xf32>
    %109 = arith.addf %48, %50 : vector<32x128xf32>
    %c0_60 = arith.constant 0 : index
    %c0_61 = arith.constant 0 : index
    %c0_62 = arith.constant 0 : index
    %110 = vector.load %arg2[%c0_60, %c0_61, %c0_62] : memref<4x32x128xf32, #tpu.memory_space<vmem>>, vector<1x32x128xf32>
    %111 = vector.shape_cast %110 : vector<1x32x128xf32> to vector<32x128xf32>
    %112 = vector.extract_strided_slice %0 {offsets = [4, 0], sizes = [1, 128], strides = [1, 1]} : vector<8x128xf32> to vector<1x128xf32>
    %113 = vector.broadcast %112 : vector<1x128xf32> to vector<32x128xf32>
    %114 = arith.mulf %111, %113 : vector<32x128xf32>
    %115 = arith.addf %109, %114 : vector<32x128xf32>
    %c1_63 = arith.constant 1 : index
    %c0_64 = arith.constant 0 : index
    %c0_65 = arith.constant 0 : index
    %116 = vector.load %arg2[%c1_63, %c0_64, %c0_65] : memref<4x32x128xf32, #tpu.memory_space<vmem>>, vector<1x32x128xf32>
    %117 = vector.shape_cast %116 : vector<1x32x128xf32> to vector<32x128xf32>
    %118 = vector.extract_strided_slice %0 {offsets = [5, 0], sizes = [1, 128], strides = [1, 1]} : vector<8x128xf32> to vector<1x128xf32>
    %119 = vector.broadcast %118 : vector<1x128xf32> to vector<32x128xf32>
    %120 = arith.mulf %117, %119 : vector<32x128xf32>
    %121 = arith.addf %115, %120 : vector<32x128xf32>
    %c2_66 = arith.constant 2 : index
    %c0_67 = arith.constant 0 : index
    %c0_68 = arith.constant 0 : index
    %122 = vector.load %arg2[%c2_66, %c0_67, %c0_68] : memref<4x32x128xf32, #tpu.memory_space<vmem>>, vector<1x32x128xf32>
    %123 = vector.shape_cast %122 : vector<1x32x128xf32> to vector<32x128xf32>
    %124 = vector.extract_strided_slice %0 {offsets = [6, 0], sizes = [1, 128], strides = [1, 1]} : vector<8x128xf32> to vector<1x128xf32>
    %125 = vector.broadcast %124 : vector<1x128xf32> to vector<32x128xf32>
    %126 = arith.mulf %123, %125 : vector<32x128xf32>
    %127 = arith.addf %121, %126 : vector<32x128xf32>
    %c3_69 = arith.constant 3 : index
    %c0_70 = arith.constant 0 : index
    %c0_71 = arith.constant 0 : index
    %128 = vector.load %arg2[%c3_69, %c0_70, %c0_71] : memref<4x32x128xf32, #tpu.memory_space<vmem>>, vector<1x32x128xf32>
    %129 = vector.shape_cast %128 : vector<1x32x128xf32> to vector<32x128xf32>
    %130 = vector.extract_strided_slice %0 {offsets = [7, 0], sizes = [1, 128], strides = [1, 1]} : vector<8x128xf32> to vector<1x128xf32>
    %131 = vector.broadcast %130 : vector<1x128xf32> to vector<32x128xf32>
    %132 = arith.mulf %129, %131 : vector<32x128xf32>
    %133 = arith.addf %127, %132 : vector<32x128xf32>
    %134 = arith.mulf %133, %133 : vector<32x128xf32>
    %135 = arith.mulf %133, %134 : vector<32x128xf32>
    %cst_72 = arith.constant 4.471500e-02 : f32
    %136 = vector.broadcast %cst_72 : f32 to vector<32x128xf32>
    %137 = arith.mulf %136, %135 : vector<32x128xf32>
    %138 = arith.addf %133, %137 : vector<32x128xf32>
    %cst_73 = arith.constant 0.797884583 : f32
    %139 = vector.broadcast %cst_73 : f32 to vector<32x128xf32>
    %140 = arith.mulf %139, %138 : vector<32x128xf32>
    %141 = math.tanh %140 : vector<32x128xf32>
    %cst_74 = arith.constant 1.000000e+00 : f32
    %142 = vector.broadcast %cst_74 : f32 to vector<32x128xf32>
    %143 = arith.addf %142, %141 : vector<32x128xf32>
    %cst_75 = arith.constant 5.000000e-01 : f32
    %144 = vector.broadcast %cst_75 : f32 to vector<32x128xf32>
    %145 = arith.mulf %144, %143 : vector<32x128xf32>
    %146 = arith.mulf %133, %145 : vector<32x128xf32>
    %c0_76 = arith.constant 0 : index
    %c0_77 = arith.constant 0 : index
    %c0_78 = arith.constant 0 : index
    %147 = vector.load %arg4[%c0_76, %c0_77, %c0_78] : memref<4x32x128xf32, #tpu.memory_space<vmem>>, vector<1x32x128xf32>
    %148 = vector.shape_cast %147 : vector<1x32x128xf32> to vector<32x128xf32>
    %149 = arith.mulf %148, %146 : vector<32x128xf32>
    %cst_79 = arith.constant dense<0.000000e+00> : vector<128xf32>
    %150 = vector.multi_reduction <add>, %149, %cst_79 [0] : vector<32x128xf32> to vector<128xf32>
    %151 = vector.shape_cast %150 : vector<128xf32> to vector<1x128xf32>
    %c1_80 = arith.constant 1 : index
    %c0_81 = arith.constant 0 : index
    %c0_82 = arith.constant 0 : index
    %152 = vector.load %arg4[%c1_80, %c0_81, %c0_82] : memref<4x32x128xf32, #tpu.memory_space<vmem>>, vector<1x32x128xf32>
    %153 = vector.shape_cast %152 : vector<1x32x128xf32> to vector<32x128xf32>
    %154 = arith.mulf %153, %146 : vector<32x128xf32>
    %cst_83 = arith.constant dense<0.000000e+00> : vector<128xf32>
    %155 = vector.multi_reduction <add>, %154, %cst_83 [0] : vector<32x128xf32> to vector<128xf32>
    %156 = vector.shape_cast %155 : vector<128xf32> to vector<1x128xf32>
    %c2_84 = arith.constant 2 : index
    %c0_85 = arith.constant 0 : index
    %c0_86 = arith.constant 0 : index
    %157 = vector.load %arg4[%c2_84, %c0_85, %c0_86] : memref<4x32x128xf32, #tpu.memory_space<vmem>>, vector<1x32x128xf32>
    %158 = vector.shape_cast %157 : vector<1x32x128xf32> to vector<32x128xf32>
    %159 = arith.mulf %158, %146 : vector<32x128xf32>
    %cst_87 = arith.constant dense<0.000000e+00> : vector<128xf32>
    %160 = vector.multi_reduction <add>, %159, %cst_87 [0] : vector<32x128xf32> to vector<128xf32>
    %161 = vector.shape_cast %160 : vector<128xf32> to vector<1x128xf32>
    %c3_88 = arith.constant 3 : index
    %c0_89 = arith.constant 0 : index
    %c0_90 = arith.constant 0 : index
    %162 = vector.load %arg4[%c3_88, %c0_89, %c0_90] : memref<4x32x128xf32, #tpu.memory_space<vmem>>, vector<1x32x128xf32>
    %163 = vector.shape_cast %162 : vector<1x32x128xf32> to vector<32x128xf32>
    %164 = arith.mulf %163, %146 : vector<32x128xf32>
    %cst_91 = arith.constant dense<0.000000e+00> : vector<128xf32>
    %165 = vector.multi_reduction <add>, %164, %cst_91 [0] : vector<32x128xf32> to vector<128xf32>
    %166 = vector.shape_cast %165 : vector<128xf32> to vector<1x128xf32>
    %167 = tpu.concatenate %93, %98, %103, %108, %151, %156, %161, %166 in 0 : vector<1x128xf32>, vector<1x128xf32>, vector<1x128xf32>, vector<1x128xf32>, vector<1x128xf32>, vector<1x128xf32>, vector<1x128xf32>, vector<1x128xf32> -> vector<8x128xf32>
    %cst_92 = arith.constant 0.923879504 : f32
    %168 = vector.broadcast %cst_92 : f32 to vector<8x128xf32>
    %169 = arith.mulf %168, %0 : vector<8x128xf32>
    %170 = arith.addf %167, %2 : vector<8x128xf32>
    %cst_93 = arith.constant -0.382683426 : f32
    %171 = vector.broadcast %cst_93 : f32 to vector<8x128xf32>
    %172 = arith.mulf %171, %170 : vector<8x128xf32>
    %173 = arith.addf %169, %172 : vector<8x128xf32>
    %c1_94 = arith.constant 1 : index
    %c0_95 = arith.constant 0 : index
    %c0_96 = arith.constant 0 : index
    %174 = vector.load %arg5[%c1_94, %c0_95, %c0_96] : memref<4x32x128xf32, #tpu.memory_space<vmem>>, vector<1x32x128xf32>
    %175 = vector.shape_cast %174 : vector<1x32x128xf32> to vector<32x128xf32>
    %176 = arith.addf %25, %175 : vector<32x128xf32>
    %c0_97 = arith.constant 0 : index
    %c0_98 = arith.constant 0 : index
    %c0_99 = arith.constant 0 : index
    %177 = vector.load %arg2[%c0_97, %c0_98, %c0_99] : memref<4x32x128xf32, #tpu.memory_space<vmem>>, vector<1x32x128xf32>
    %178 = vector.shape_cast %177 : vector<1x32x128xf32> to vector<32x128xf32>
    %179 = vector.extract_strided_slice %173 {offsets = [0, 0], sizes = [1, 128], strides = [1, 1]} : vector<8x128xf32> to vector<1x128xf32>
    %180 = vector.broadcast %179 : vector<1x128xf32> to vector<32x128xf32>
    %181 = arith.mulf %178, %180 : vector<32x128xf32>
    %182 = arith.addf %176, %181 : vector<32x128xf32>
    %c1_100 = arith.constant 1 : index
    %c0_101 = arith.constant 0 : index
    %c0_102 = arith.constant 0 : index
    %183 = vector.load %arg2[%c1_100, %c0_101, %c0_102] : memref<4x32x128xf32, #tpu.memory_space<vmem>>, vector<1x32x128xf32>
    %184 = vector.shape_cast %183 : vector<1x32x128xf32> to vector<32x128xf32>
    %185 = vector.extract_strided_slice %173 {offsets = [1, 0], sizes = [1, 128], strides = [1, 1]} : vector<8x128xf32> to vector<1x128xf32>
    %186 = vector.broadcast %185 : vector<1x128xf32> to vector<32x128xf32>
    %187 = arith.mulf %184, %186 : vector<32x128xf32>
    %188 = arith.addf %182, %187 : vector<32x128xf32>
    %c2_103 = arith.constant 2 : index
    %c0_104 = arith.constant 0 : index
    %c0_105 = arith.constant 0 : index
    %189 = vector.load %arg2[%c2_103, %c0_104, %c0_105] : memref<4x32x128xf32, #tpu.memory_space<vmem>>, vector<1x32x128xf32>
    %190 = vector.shape_cast %189 : vector<1x32x128xf32> to vector<32x128xf32>
    %191 = vector.extract_strided_slice %173 {offsets = [2, 0], sizes = [1, 128], strides = [1, 1]} : vector<8x128xf32> to vector<1x128xf32>
    %192 = vector.broadcast %191 : vector<1x128xf32> to vector<32x128xf32>
    %193 = arith.mulf %190, %192 : vector<32x128xf32>
    %194 = arith.addf %188, %193 : vector<32x128xf32>
    %c3_106 = arith.constant 3 : index
    %c0_107 = arith.constant 0 : index
    %c0_108 = arith.constant 0 : index
    %195 = vector.load %arg2[%c3_106, %c0_107, %c0_108] : memref<4x32x128xf32, #tpu.memory_space<vmem>>, vector<1x32x128xf32>
    %196 = vector.shape_cast %195 : vector<1x32x128xf32> to vector<32x128xf32>
    %197 = vector.extract_strided_slice %173 {offsets = [3, 0], sizes = [1, 128], strides = [1, 1]} : vector<8x128xf32> to vector<1x128xf32>
    %198 = vector.broadcast %197 : vector<1x128xf32> to vector<32x128xf32>
    %199 = arith.mulf %196, %198 : vector<32x128xf32>
    %200 = arith.addf %194, %199 : vector<32x128xf32>
    %201 = arith.mulf %200, %200 : vector<32x128xf32>
    %202 = arith.mulf %200, %201 : vector<32x128xf32>
    %cst_109 = arith.constant 4.471500e-02 : f32
    %203 = vector.broadcast %cst_109 : f32 to vector<32x128xf32>
    %204 = arith.mulf %203, %202 : vector<32x128xf32>
    %205 = arith.addf %200, %204 : vector<32x128xf32>
    %cst_110 = arith.constant 0.797884583 : f32
    %206 = vector.broadcast %cst_110 : f32 to vector<32x128xf32>
    %207 = arith.mulf %206, %205 : vector<32x128xf32>
    %208 = math.tanh %207 : vector<32x128xf32>
    %cst_111 = arith.constant 1.000000e+00 : f32
    %209 = vector.broadcast %cst_111 : f32 to vector<32x128xf32>
    %210 = arith.addf %209, %208 : vector<32x128xf32>
    %cst_112 = arith.constant 5.000000e-01 : f32
    %211 = vector.broadcast %cst_112 : f32 to vector<32x128xf32>
    %212 = arith.mulf %211, %210 : vector<32x128xf32>
    %213 = arith.mulf %200, %212 : vector<32x128xf32>
    %c0_113 = arith.constant 0 : index
    %c0_114 = arith.constant 0 : index
    %c0_115 = arith.constant 0 : index
    %214 = vector.load %arg4[%c0_113, %c0_114, %c0_115] : memref<4x32x128xf32, #tpu.memory_space<vmem>>, vector<1x32x128xf32>
    %215 = vector.shape_cast %214 : vector<1x32x128xf32> to vector<32x128xf32>
    %216 = arith.mulf %215, %213 : vector<32x128xf32>
    %cst_116 = arith.constant dense<0.000000e+00> : vector<128xf32>
    %217 = vector.multi_reduction <add>, %216, %cst_116 [0] : vector<32x128xf32> to vector<128xf32>
    %218 = vector.shape_cast %217 : vector<128xf32> to vector<1x128xf32>
    %c1_117 = arith.constant 1 : index
    %c0_118 = arith.constant 0 : index
    %c0_119 = arith.constant 0 : index
    %219 = vector.load %arg4[%c1_117, %c0_118, %c0_119] : memref<4x32x128xf32, #tpu.memory_space<vmem>>, vector<1x32x128xf32>
    %220 = vector.shape_cast %219 : vector<1x32x128xf32> to vector<32x128xf32>
    %221 = arith.mulf %220, %213 : vector<32x128xf32>
    %cst_120 = arith.constant dense<0.000000e+00> : vector<128xf32>
    %222 = vector.multi_reduction <add>, %221, %cst_120 [0] : vector<32x128xf32> to vector<128xf32>
    %223 = vector.shape_cast %222 : vector<128xf32> to vector<1x128xf32>
    %c2_121 = arith.constant 2 : index
    %c0_122 = arith.constant 0 : index
    %c0_123 = arith.constant 0 : index
    %224 = vector.load %arg4[%c2_121, %c0_122, %c0_123] : memref<4x32x128xf32, #tpu.memory_space<vmem>>, vector<1x32x128xf32>
    %225 = vector.shape_cast %224 : vector<1x32x128xf32> to vector<32x128xf32>
    %226 = arith.mulf %225, %213 : vector<32x128xf32>
    %cst_124 = arith.constant dense<0.000000e+00> : vector<128xf32>
    %227 = vector.multi_reduction <add>, %226, %cst_124 [0] : vector<32x128xf32> to vector<128xf32>
    %228 = vector.shape_cast %227 : vector<128xf32> to vector<1x128xf32>
    %c3_125 = arith.constant 3 : index
    %c0_126 = arith.constant 0 : index
    %c0_127 = arith.constant 0 : index
    %229 = vector.load %arg4[%c3_125, %c0_126, %c0_127] : memref<4x32x128xf32, #tpu.memory_space<vmem>>, vector<1x32x128xf32>
    %230 = vector.shape_cast %229 : vector<1x32x128xf32> to vector<32x128xf32>
    %231 = arith.mulf %230, %213 : vector<32x128xf32>
    %cst_128 = arith.constant dense<0.000000e+00> : vector<128xf32>
    %232 = vector.multi_reduction <add>, %231, %cst_128 [0] : vector<32x128xf32> to vector<128xf32>
    %233 = vector.shape_cast %232 : vector<128xf32> to vector<1x128xf32>
    %234 = arith.addf %48, %175 : vector<32x128xf32>
    %c0_129 = arith.constant 0 : index
    %c0_130 = arith.constant 0 : index
    %c0_131 = arith.constant 0 : index
    %235 = vector.load %arg2[%c0_129, %c0_130, %c0_131] : memref<4x32x128xf32, #tpu.memory_space<vmem>>, vector<1x32x128xf32>
    %236 = vector.shape_cast %235 : vector<1x32x128xf32> to vector<32x128xf32>
    %237 = vector.extract_strided_slice %173 {offsets = [4, 0], sizes = [1, 128], strides = [1, 1]} : vector<8x128xf32> to vector<1x128xf32>
    %238 = vector.broadcast %237 : vector<1x128xf32> to vector<32x128xf32>
    %239 = arith.mulf %236, %238 : vector<32x128xf32>
    %240 = arith.addf %234, %239 : vector<32x128xf32>
    %c1_132 = arith.constant 1 : index
    %c0_133 = arith.constant 0 : index
    %c0_134 = arith.constant 0 : index
    %241 = vector.load %arg2[%c1_132, %c0_133, %c0_134] : memref<4x32x128xf32, #tpu.memory_space<vmem>>, vector<1x32x128xf32>
    %242 = vector.shape_cast %241 : vector<1x32x128xf32> to vector<32x128xf32>
    %243 = vector.extract_strided_slice %173 {offsets = [5, 0], sizes = [1, 128], strides = [1, 1]} : vector<8x128xf32> to vector<1x128xf32>
    %244 = vector.broadcast %243 : vector<1x128xf32> to vector<32x128xf32>
    %245 = arith.mulf %242, %244 : vector<32x128xf32>
    %246 = arith.addf %240, %245 : vector<32x128xf32>
    %c2_135 = arith.constant 2 : index
    %c0_136 = arith.constant 0 : index
    %c0_137 = arith.constant 0 : index
    %247 = vector.load %arg2[%c2_135, %c0_136, %c0_137] : memref<4x32x128xf32, #tpu.memory_space<vmem>>, vector<1x32x128xf32>
    %248 = vector.shape_cast %247 : vector<1x32x128xf32> to vector<32x128xf32>
    %249 = vector.extract_strided_slice %173 {offsets = [6, 0], sizes = [1, 128], strides = [1, 1]} : vector<8x128xf32> to vector<1x128xf32>
    %250 = vector.broadcast %249 : vector<1x128xf32> to vector<32x128xf32>
    %251 = arith.mulf %248, %250 : vector<32x128xf32>
    %252 = arith.addf %246, %251 : vector<32x128xf32>
    %c3_138 = arith.constant 3 : index
    %c0_139 = arith.constant 0 : index
    %c0_140 = arith.constant 0 : index
    %253 = vector.load %arg2[%c3_138, %c0_139, %c0_140] : memref<4x32x128xf32, #tpu.memory_space<vmem>>, vector<1x32x128xf32>
    %254 = vector.shape_cast %253 : vector<1x32x128xf32> to vector<32x128xf32>
    %255 = vector.extract_strided_slice %173 {offsets = [7, 0], sizes = [1, 128], strides = [1, 1]} : vector<8x128xf32> to vector<1x128xf32>
    %256 = vector.broadcast %255 : vector<1x128xf32> to vector<32x128xf32>
    %257 = arith.mulf %254, %256 : vector<32x128xf32>
    %258 = arith.addf %252, %257 : vector<32x128xf32>
    %259 = arith.mulf %258, %258 : vector<32x128xf32>
    %260 = arith.mulf %258, %259 : vector<32x128xf32>
    %cst_141 = arith.constant 4.471500e-02 : f32
    %261 = vector.broadcast %cst_141 : f32 to vector<32x128xf32>
    %262 = arith.mulf %261, %260 : vector<32x128xf32>
    %263 = arith.addf %258, %262 : vector<32x128xf32>
    %cst_142 = arith.constant 0.797884583 : f32
    %264 = vector.broadcast %cst_142 : f32 to vector<32x128xf32>
    %265 = arith.mulf %264, %263 : vector<32x128xf32>
    %266 = math.tanh %265 : vector<32x128xf32>
    %cst_143 = arith.constant 1.000000e+00 : f32
    %267 = vector.broadcast %cst_143 : f32 to vector<32x128xf32>
    %268 = arith.addf %267, %266 : vector<32x128xf32>
    %cst_144 = arith.constant 5.000000e-01 : f32
    %269 = vector.broadcast %cst_144 : f32 to vector<32x128xf32>
    %270 = arith.mulf %269, %268 : vector<32x128xf32>
    %271 = arith.mulf %258, %270 : vector<32x128xf32>
    %c0_145 = arith.constant 0 : index
    %c0_146 = arith.constant 0 : index
    %c0_147 = arith.constant 0 : index
    %272 = vector.load %arg4[%c0_145, %c0_146, %c0_147] : memref<4x32x128xf32, #tpu.memory_space<vmem>>, vector<1x32x128xf32>
    %273 = vector.shape_cast %272 : vector<1x32x128xf32> to vector<32x128xf32>
    %274 = arith.mulf %273, %271 : vector<32x128xf32>
    %cst_148 = arith.constant dense<0.000000e+00> : vector<128xf32>
    %275 = vector.multi_reduction <add>, %274, %cst_148 [0] : vector<32x128xf32> to vector<128xf32>
    %276 = vector.shape_cast %275 : vector<128xf32> to vector<1x128xf32>
    %c1_149 = arith.constant 1 : index
    %c0_150 = arith.constant 0 : index
    %c0_151 = arith.constant 0 : index
    %277 = vector.load %arg4[%c1_149, %c0_150, %c0_151] : memref<4x32x128xf32, #tpu.memory_space<vmem>>, vector<1x32x128xf32>
    %278 = vector.shape_cast %277 : vector<1x32x128xf32> to vector<32x128xf32>
    %279 = arith.mulf %278, %271 : vector<32x128xf32>
    %cst_152 = arith.constant dense<0.000000e+00> : vector<128xf32>
    %280 = vector.multi_reduction <add>, %279, %cst_152 [0] : vector<32x128xf32> to vector<128xf32>
    %281 = vector.shape_cast %280 : vector<128xf32> to vector<1x128xf32>
    %c2_153 = arith.constant 2 : index
    %c0_154 = arith.constant 0 : index
    %c0_155 = arith.constant 0 : index
    %282 = vector.load %arg4[%c2_153, %c0_154, %c0_155] : memref<4x32x128xf32, #tpu.memory_space<vmem>>, vector<1x32x128xf32>
    %283 = vector.shape_cast %282 : vector<1x32x128xf32> to vector<32x128xf32>
    %284 = arith.mulf %283, %271 : vector<32x128xf32>
    %cst_156 = arith.constant dense<0.000000e+00> : vector<128xf32>
    %285 = vector.multi_reduction <add>, %284, %cst_156 [0] : vector<32x128xf32> to vector<128xf32>
    %286 = vector.shape_cast %285 : vector<128xf32> to vector<1x128xf32>
    %c3_157 = arith.constant 3 : index
    %c0_158 = arith.constant 0 : index
    %c0_159 = arith.constant 0 : index
    %287 = vector.load %arg4[%c3_157, %c0_158, %c0_159] : memref<4x32x128xf32, #tpu.memory_space<vmem>>, vector<1x32x128xf32>
    %288 = vector.shape_cast %287 : vector<1x32x128xf32> to vector<32x128xf32>
    %289 = arith.mulf %288, %271 : vector<32x128xf32>
    %cst_160 = arith.constant dense<0.000000e+00> : vector<128xf32>
    %290 = vector.multi_reduction <add>, %289, %cst_160 [0] : vector<32x128xf32> to vector<128xf32>
    %291 = vector.shape_cast %290 : vector<128xf32> to vector<1x128xf32>
    %292 = tpu.concatenate %218, %223, %228, %233, %276, %281, %286, %291 in 0 : vector<1x128xf32>, vector<1x128xf32>, vector<1x128xf32>, vector<1x128xf32>, vector<1x128xf32>, vector<1x128xf32>, vector<1x128xf32>, vector<1x128xf32> -> vector<8x128xf32>
    %cst_161 = arith.constant 0.923879504 : f32
    %293 = vector.broadcast %cst_161 : f32 to vector<8x128xf32>
    %294 = arith.mulf %293, %173 : vector<8x128xf32>
    %295 = arith.addf %292, %2 : vector<8x128xf32>
    %cst_162 = arith.constant -0.382683426 : f32
    %296 = vector.broadcast %cst_162 : f32 to vector<8x128xf32>
    %297 = arith.mulf %296, %295 : vector<8x128xf32>
    %298 = arith.addf %294, %297 : vector<8x128xf32>
    %c2_163 = arith.constant 2 : index
    %c0_164 = arith.constant 0 : index
    %c0_165 = arith.constant 0 : index
    %299 = vector.load %arg5[%c2_163, %c0_164, %c0_165] : memref<4x32x128xf32, #tpu.memory_space<vmem>>, vector<1x32x128xf32>
    %300 = vector.shape_cast %299 : vector<1x32x128xf32> to vector<32x128xf32>
    %301 = arith.addf %25, %300 : vector<32x128xf32>
    %c0_166 = arith.constant 0 : index
    %c0_167 = arith.constant 0 : index
    %c0_168 = arith.constant 0 : index
    %302 = vector.load %arg2[%c0_166, %c0_167, %c0_168] : memref<4x32x128xf32, #tpu.memory_space<vmem>>, vector<1x32x128xf32>
    %303 = vector.shape_cast %302 : vector<1x32x128xf32> to vector<32x128xf32>
    %304 = vector.extract_strided_slice %298 {offsets = [0, 0], sizes = [1, 128], strides = [1, 1]} : vector<8x128xf32> to vector<1x128xf32>
    %305 = vector.broadcast %304 : vector<1x128xf32> to vector<32x128xf32>
    %306 = arith.mulf %303, %305 : vector<32x128xf32>
    %307 = arith.addf %301, %306 : vector<32x128xf32>
    %c1_169 = arith.constant 1 : index
    %c0_170 = arith.constant 0 : index
    %c0_171 = arith.constant 0 : index
    %308 = vector.load %arg2[%c1_169, %c0_170, %c0_171] : memref<4x32x128xf32, #tpu.memory_space<vmem>>, vector<1x32x128xf32>
    %309 = vector.shape_cast %308 : vector<1x32x128xf32> to vector<32x128xf32>
    %310 = vector.extract_strided_slice %298 {offsets = [1, 0], sizes = [1, 128], strides = [1, 1]} : vector<8x128xf32> to vector<1x128xf32>
    %311 = vector.broadcast %310 : vector<1x128xf32> to vector<32x128xf32>
    %312 = arith.mulf %309, %311 : vector<32x128xf32>
    %313 = arith.addf %307, %312 : vector<32x128xf32>
    %c2_172 = arith.constant 2 : index
    %c0_173 = arith.constant 0 : index
    %c0_174 = arith.constant 0 : index
    %314 = vector.load %arg2[%c2_172, %c0_173, %c0_174] : memref<4x32x128xf32, #tpu.memory_space<vmem>>, vector<1x32x128xf32>
    %315 = vector.shape_cast %314 : vector<1x32x128xf32> to vector<32x128xf32>
    %316 = vector.extract_strided_slice %298 {offsets = [2, 0], sizes = [1, 128], strides = [1, 1]} : vector<8x128xf32> to vector<1x128xf32>
    %317 = vector.broadcast %316 : vector<1x128xf32> to vector<32x128xf32>
    %318 = arith.mulf %315, %317 : vector<32x128xf32>
    %319 = arith.addf %313, %318 : vector<32x128xf32>
    %c3_175 = arith.constant 3 : index
    %c0_176 = arith.constant 0 : index
    %c0_177 = arith.constant 0 : index
    %320 = vector.load %arg2[%c3_175, %c0_176, %c0_177] : memref<4x32x128xf32, #tpu.memory_space<vmem>>, vector<1x32x128xf32>
    %321 = vector.shape_cast %320 : vector<1x32x128xf32> to vector<32x128xf32>
    %322 = vector.extract_strided_slice %298 {offsets = [3, 0], sizes = [1, 128], strides = [1, 1]} : vector<8x128xf32> to vector<1x128xf32>
    %323 = vector.broadcast %322 : vector<1x128xf32> to vector<32x128xf32>
    %324 = arith.mulf %321, %323 : vector<32x128xf32>
    %325 = arith.addf %319, %324 : vector<32x128xf32>
    %326 = arith.mulf %325, %325 : vector<32x128xf32>
    %327 = arith.mulf %325, %326 : vector<32x128xf32>
    %cst_178 = arith.constant 4.471500e-02 : f32
    %328 = vector.broadcast %cst_178 : f32 to vector<32x128xf32>
    %329 = arith.mulf %328, %327 : vector<32x128xf32>
    %330 = arith.addf %325, %329 : vector<32x128xf32>
    %cst_179 = arith.constant 0.797884583 : f32
    %331 = vector.broadcast %cst_179 : f32 to vector<32x128xf32>
    %332 = arith.mulf %331, %330 : vector<32x128xf32>
    %333 = math.tanh %332 : vector<32x128xf32>
    %cst_180 = arith.constant 1.000000e+00 : f32
    %334 = vector.broadcast %cst_180 : f32 to vector<32x128xf32>
    %335 = arith.addf %334, %333 : vector<32x128xf32>
    %cst_181 = arith.constant 5.000000e-01 : f32
    %336 = vector.broadcast %cst_181 : f32 to vector<32x128xf32>
    %337 = arith.mulf %336, %335 : vector<32x128xf32>
    %338 = arith.mulf %325, %337 : vector<32x128xf32>
    %c0_182 = arith.constant 0 : index
    %c0_183 = arith.constant 0 : index
    %c0_184 = arith.constant 0 : index
    %339 = vector.load %arg4[%c0_182, %c0_183, %c0_184] : memref<4x32x128xf32, #tpu.memory_space<vmem>>, vector<1x32x128xf32>
    %340 = vector.shape_cast %339 : vector<1x32x128xf32> to vector<32x128xf32>
    %341 = arith.mulf %340, %338 : vector<32x128xf32>
    %cst_185 = arith.constant dense<0.000000e+00> : vector<128xf32>
    %342 = vector.multi_reduction <add>, %341, %cst_185 [0] : vector<32x128xf32> to vector<128xf32>
    %343 = vector.shape_cast %342 : vector<128xf32> to vector<1x128xf32>
    %c1_186 = arith.constant 1 : index
    %c0_187 = arith.constant 0 : index
    %c0_188 = arith.constant 0 : index
    %344 = vector.load %arg4[%c1_186, %c0_187, %c0_188] : memref<4x32x128xf32, #tpu.memory_space<vmem>>, vector<1x32x128xf32>
    %345 = vector.shape_cast %344 : vector<1x32x128xf32> to vector<32x128xf32>
    %346 = arith.mulf %345, %338 : vector<32x128xf32>
    %cst_189 = arith.constant dense<0.000000e+00> : vector<128xf32>
    %347 = vector.multi_reduction <add>, %346, %cst_189 [0] : vector<32x128xf32> to vector<128xf32>
    %348 = vector.shape_cast %347 : vector<128xf32> to vector<1x128xf32>
    %c2_190 = arith.constant 2 : index
    %c0_191 = arith.constant 0 : index
    %c0_192 = arith.constant 0 : index
    %349 = vector.load %arg4[%c2_190, %c0_191, %c0_192] : memref<4x32x128xf32, #tpu.memory_space<vmem>>, vector<1x32x128xf32>
    %350 = vector.shape_cast %349 : vector<1x32x128xf32> to vector<32x128xf32>
    %351 = arith.mulf %350, %338 : vector<32x128xf32>
    %cst_193 = arith.constant dense<0.000000e+00> : vector<128xf32>
    %352 = vector.multi_reduction <add>, %351, %cst_193 [0] : vector<32x128xf32> to vector<128xf32>
    %353 = vector.shape_cast %352 : vector<128xf32> to vector<1x128xf32>
    %c3_194 = arith.constant 3 : index
    %c0_195 = arith.constant 0 : index
    %c0_196 = arith.constant 0 : index
    %354 = vector.load %arg4[%c3_194, %c0_195, %c0_196] : memref<4x32x128xf32, #tpu.memory_space<vmem>>, vector<1x32x128xf32>
    %355 = vector.shape_cast %354 : vector<1x32x128xf32> to vector<32x128xf32>
    %356 = arith.mulf %355, %338 : vector<32x128xf32>
    %cst_197 = arith.constant dense<0.000000e+00> : vector<128xf32>
    %357 = vector.multi_reduction <add>, %356, %cst_197 [0] : vector<32x128xf32> to vector<128xf32>
    %358 = vector.shape_cast %357 : vector<128xf32> to vector<1x128xf32>
    %359 = arith.addf %48, %300 : vector<32x128xf32>
    %c0_198 = arith.constant 0 : index
    %c0_199 = arith.constant 0 : index
    %c0_200 = arith.constant 0 : index
    %360 = vector.load %arg2[%c0_198, %c0_199, %c0_200] : memref<4x32x128xf32, #tpu.memory_space<vmem>>, vector<1x32x128xf32>
    %361 = vector.shape_cast %360 : vector<1x32x128xf32> to vector<32x128xf32>
    %362 = vector.extract_strided_slice %298 {offsets = [4, 0], sizes = [1, 128], strides = [1, 1]} : vector<8x128xf32> to vector<1x128xf32>
    %363 = vector.broadcast %362 : vector<1x128xf32> to vector<32x128xf32>
    %364 = arith.mulf %361, %363 : vector<32x128xf32>
    %365 = arith.addf %359, %364 : vector<32x128xf32>
    %c1_201 = arith.constant 1 : index
    %c0_202 = arith.constant 0 : index
    %c0_203 = arith.constant 0 : index
    %366 = vector.load %arg2[%c1_201, %c0_202, %c0_203] : memref<4x32x128xf32, #tpu.memory_space<vmem>>, vector<1x32x128xf32>
    %367 = vector.shape_cast %366 : vector<1x32x128xf32> to vector<32x128xf32>
    %368 = vector.extract_strided_slice %298 {offsets = [5, 0], sizes = [1, 128], strides = [1, 1]} : vector<8x128xf32> to vector<1x128xf32>
    %369 = vector.broadcast %368 : vector<1x128xf32> to vector<32x128xf32>
    %370 = arith.mulf %367, %369 : vector<32x128xf32>
    %371 = arith.addf %365, %370 : vector<32x128xf32>
    %c2_204 = arith.constant 2 : index
    %c0_205 = arith.constant 0 : index
    %c0_206 = arith.constant 0 : index
    %372 = vector.load %arg2[%c2_204, %c0_205, %c0_206] : memref<4x32x128xf32, #tpu.memory_space<vmem>>, vector<1x32x128xf32>
    %373 = vector.shape_cast %372 : vector<1x32x128xf32> to vector<32x128xf32>
    %374 = vector.extract_strided_slice %298 {offsets = [6, 0], sizes = [1, 128], strides = [1, 1]} : vector<8x128xf32> to vector<1x128xf32>
    %375 = vector.broadcast %374 : vector<1x128xf32> to vector<32x128xf32>
    %376 = arith.mulf %373, %375 : vector<32x128xf32>
    %377 = arith.addf %371, %376 : vector<32x128xf32>
    %c3_207 = arith.constant 3 : index
    %c0_208 = arith.constant 0 : index
    %c0_209 = arith.constant 0 : index
    %378 = vector.load %arg2[%c3_207, %c0_208, %c0_209] : memref<4x32x128xf32, #tpu.memory_space<vmem>>, vector<1x32x128xf32>
    %379 = vector.shape_cast %378 : vector<1x32x128xf32> to vector<32x128xf32>
    %380 = vector.extract_strided_slice %298 {offsets = [7, 0], sizes = [1, 128], strides = [1, 1]} : vector<8x128xf32> to vector<1x128xf32>
    %381 = vector.broadcast %380 : vector<1x128xf32> to vector<32x128xf32>
    %382 = arith.mulf %379, %381 : vector<32x128xf32>
    %383 = arith.addf %377, %382 : vector<32x128xf32>
    %384 = arith.mulf %383, %383 : vector<32x128xf32>
    %385 = arith.mulf %383, %384 : vector<32x128xf32>
    %cst_210 = arith.constant 4.471500e-02 : f32
    %386 = vector.broadcast %cst_210 : f32 to vector<32x128xf32>
    %387 = arith.mulf %386, %385 : vector<32x128xf32>
    %388 = arith.addf %383, %387 : vector<32x128xf32>
    %cst_211 = arith.constant 0.797884583 : f32
    %389 = vector.broadcast %cst_211 : f32 to vector<32x128xf32>
    %390 = arith.mulf %389, %388 : vector<32x128xf32>
    %391 = math.tanh %390 : vector<32x128xf32>
    %cst_212 = arith.constant 1.000000e+00 : f32
    %392 = vector.broadcast %cst_212 : f32 to vector<32x128xf32>
    %393 = arith.addf %392, %391 : vector<32x128xf32>
    %cst_213 = arith.constant 5.000000e-01 : f32
    %394 = vector.broadcast %cst_213 : f32 to vector<32x128xf32>
    %395 = arith.mulf %394, %393 : vector<32x128xf32>
    %396 = arith.mulf %383, %395 : vector<32x128xf32>
    %c0_214 = arith.constant 0 : index
    %c0_215 = arith.constant 0 : index
    %c0_216 = arith.constant 0 : index
    %397 = vector.load %arg4[%c0_214, %c0_215, %c0_216] : memref<4x32x128xf32, #tpu.memory_space<vmem>>, vector<1x32x128xf32>
    %398 = vector.shape_cast %397 : vector<1x32x128xf32> to vector<32x128xf32>
    %399 = arith.mulf %398, %396 : vector<32x128xf32>
    %cst_217 = arith.constant dense<0.000000e+00> : vector<128xf32>
    %400 = vector.multi_reduction <add>, %399, %cst_217 [0] : vector<32x128xf32> to vector<128xf32>
    %401 = vector.shape_cast %400 : vector<128xf32> to vector<1x128xf32>
    %c1_218 = arith.constant 1 : index
    %c0_219 = arith.constant 0 : index
    %c0_220 = arith.constant 0 : index
    %402 = vector.load %arg4[%c1_218, %c0_219, %c0_220] : memref<4x32x128xf32, #tpu.memory_space<vmem>>, vector<1x32x128xf32>
    %403 = vector.shape_cast %402 : vector<1x32x128xf32> to vector<32x128xf32>
    %404 = arith.mulf %403, %396 : vector<32x128xf32>
    %cst_221 = arith.constant dense<0.000000e+00> : vector<128xf32>
    %405 = vector.multi_reduction <add>, %404, %cst_221 [0] : vector<32x128xf32> to vector<128xf32>
    %406 = vector.shape_cast %405 : vector<128xf32> to vector<1x128xf32>
    %c2_222 = arith.constant 2 : index
    %c0_223 = arith.constant 0 : index
    %c0_224 = arith.constant 0 : index
    %407 = vector.load %arg4[%c2_222, %c0_223, %c0_224] : memref<4x32x128xf32, #tpu.memory_space<vmem>>, vector<1x32x128xf32>
    %408 = vector.shape_cast %407 : vector<1x32x128xf32> to vector<32x128xf32>
    %409 = arith.mulf %408, %396 : vector<32x128xf32>
    %cst_225 = arith.constant dense<0.000000e+00> : vector<128xf32>
    %410 = vector.multi_reduction <add>, %409, %cst_225 [0] : vector<32x128xf32> to vector<128xf32>
    %411 = vector.shape_cast %410 : vector<128xf32> to vector<1x128xf32>
    %c3_226 = arith.constant 3 : index
    %c0_227 = arith.constant 0 : index
    %c0_228 = arith.constant 0 : index
    %412 = vector.load %arg4[%c3_226, %c0_227, %c0_228] : memref<4x32x128xf32, #tpu.memory_space<vmem>>, vector<1x32x128xf32>
    %413 = vector.shape_cast %412 : vector<1x32x128xf32> to vector<32x128xf32>
    %414 = arith.mulf %413, %396 : vector<32x128xf32>
    %cst_229 = arith.constant dense<0.000000e+00> : vector<128xf32>
    %415 = vector.multi_reduction <add>, %414, %cst_229 [0] : vector<32x128xf32> to vector<128xf32>
    %416 = vector.shape_cast %415 : vector<128xf32> to vector<1x128xf32>
    %417 = tpu.concatenate %343, %348, %353, %358, %401, %406, %411, %416 in 0 : vector<1x128xf32>, vector<1x128xf32>, vector<1x128xf32>, vector<1x128xf32>, vector<1x128xf32>, vector<1x128xf32>, vector<1x128xf32>, vector<1x128xf32> -> vector<8x128xf32>
    %cst_230 = arith.constant 0.923879504 : f32
    %418 = vector.broadcast %cst_230 : f32 to vector<8x128xf32>
    %419 = arith.mulf %418, %298 : vector<8x128xf32>
    %420 = arith.addf %417, %2 : vector<8x128xf32>
    %cst_231 = arith.constant -0.382683426 : f32
    %421 = vector.broadcast %cst_231 : f32 to vector<8x128xf32>
    %422 = arith.mulf %421, %420 : vector<8x128xf32>
    %423 = arith.addf %419, %422 : vector<8x128xf32>
    %c3_232 = arith.constant 3 : index
    %c0_233 = arith.constant 0 : index
    %c0_234 = arith.constant 0 : index
    %424 = vector.load %arg5[%c3_232, %c0_233, %c0_234] : memref<4x32x128xf32, #tpu.memory_space<vmem>>, vector<1x32x128xf32>
    %425 = vector.shape_cast %424 : vector<1x32x128xf32> to vector<32x128xf32>
    %426 = arith.addf %25, %425 : vector<32x128xf32>
    %c0_235 = arith.constant 0 : index
    %c0_236 = arith.constant 0 : index
    %c0_237 = arith.constant 0 : index
    %427 = vector.load %arg2[%c0_235, %c0_236, %c0_237] : memref<4x32x128xf32, #tpu.memory_space<vmem>>, vector<1x32x128xf32>
    %428 = vector.shape_cast %427 : vector<1x32x128xf32> to vector<32x128xf32>
    %429 = vector.extract_strided_slice %423 {offsets = [0, 0], sizes = [1, 128], strides = [1, 1]} : vector<8x128xf32> to vector<1x128xf32>
    %430 = vector.broadcast %429 : vector<1x128xf32> to vector<32x128xf32>
    %431 = arith.mulf %428, %430 : vector<32x128xf32>
    %432 = arith.addf %426, %431 : vector<32x128xf32>
    %c1_238 = arith.constant 1 : index
    %c0_239 = arith.constant 0 : index
    %c0_240 = arith.constant 0 : index
    %433 = vector.load %arg2[%c1_238, %c0_239, %c0_240] : memref<4x32x128xf32, #tpu.memory_space<vmem>>, vector<1x32x128xf32>
    %434 = vector.shape_cast %433 : vector<1x32x128xf32> to vector<32x128xf32>
    %435 = vector.extract_strided_slice %423 {offsets = [1, 0], sizes = [1, 128], strides = [1, 1]} : vector<8x128xf32> to vector<1x128xf32>
    %436 = vector.broadcast %435 : vector<1x128xf32> to vector<32x128xf32>
    %437 = arith.mulf %434, %436 : vector<32x128xf32>
    %438 = arith.addf %432, %437 : vector<32x128xf32>
    %c2_241 = arith.constant 2 : index
    %c0_242 = arith.constant 0 : index
    %c0_243 = arith.constant 0 : index
    %439 = vector.load %arg2[%c2_241, %c0_242, %c0_243] : memref<4x32x128xf32, #tpu.memory_space<vmem>>, vector<1x32x128xf32>
    %440 = vector.shape_cast %439 : vector<1x32x128xf32> to vector<32x128xf32>
    %441 = vector.extract_strided_slice %423 {offsets = [2, 0], sizes = [1, 128], strides = [1, 1]} : vector<8x128xf32> to vector<1x128xf32>
    %442 = vector.broadcast %441 : vector<1x128xf32> to vector<32x128xf32>
    %443 = arith.mulf %440, %442 : vector<32x128xf32>
    %444 = arith.addf %438, %443 : vector<32x128xf32>
    %c3_244 = arith.constant 3 : index
    %c0_245 = arith.constant 0 : index
    %c0_246 = arith.constant 0 : index
    %445 = vector.load %arg2[%c3_244, %c0_245, %c0_246] : memref<4x32x128xf32, #tpu.memory_space<vmem>>, vector<1x32x128xf32>
    %446 = vector.shape_cast %445 : vector<1x32x128xf32> to vector<32x128xf32>
    %447 = vector.extract_strided_slice %423 {offsets = [3, 0], sizes = [1, 128], strides = [1, 1]} : vector<8x128xf32> to vector<1x128xf32>
    %448 = vector.broadcast %447 : vector<1x128xf32> to vector<32x128xf32>
    %449 = arith.mulf %446, %448 : vector<32x128xf32>
    %450 = arith.addf %444, %449 : vector<32x128xf32>
    %451 = arith.mulf %450, %450 : vector<32x128xf32>
    %452 = arith.mulf %450, %451 : vector<32x128xf32>
    %cst_247 = arith.constant 4.471500e-02 : f32
    %453 = vector.broadcast %cst_247 : f32 to vector<32x128xf32>
    %454 = arith.mulf %453, %452 : vector<32x128xf32>
    %455 = arith.addf %450, %454 : vector<32x128xf32>
    %cst_248 = arith.constant 0.797884583 : f32
    %456 = vector.broadcast %cst_248 : f32 to vector<32x128xf32>
    %457 = arith.mulf %456, %455 : vector<32x128xf32>
    %458 = math.tanh %457 : vector<32x128xf32>
    %cst_249 = arith.constant 1.000000e+00 : f32
    %459 = vector.broadcast %cst_249 : f32 to vector<32x128xf32>
    %460 = arith.addf %459, %458 : vector<32x128xf32>
    %cst_250 = arith.constant 5.000000e-01 : f32
    %461 = vector.broadcast %cst_250 : f32 to vector<32x128xf32>
    %462 = arith.mulf %461, %460 : vector<32x128xf32>
    %463 = arith.mulf %450, %462 : vector<32x128xf32>
    %c0_251 = arith.constant 0 : index
    %c0_252 = arith.constant 0 : index
    %c0_253 = arith.constant 0 : index
    %464 = vector.load %arg4[%c0_251, %c0_252, %c0_253] : memref<4x32x128xf32, #tpu.memory_space<vmem>>, vector<1x32x128xf32>
    %465 = vector.shape_cast %464 : vector<1x32x128xf32> to vector<32x128xf32>
    %466 = arith.mulf %465, %463 : vector<32x128xf32>
    %cst_254 = arith.constant dense<0.000000e+00> : vector<128xf32>
    %467 = vector.multi_reduction <add>, %466, %cst_254 [0] : vector<32x128xf32> to vector<128xf32>
    %468 = vector.shape_cast %467 : vector<128xf32> to vector<1x128xf32>
    %c1_255 = arith.constant 1 : index
    %c0_256 = arith.constant 0 : index
    %c0_257 = arith.constant 0 : index
    %469 = vector.load %arg4[%c1_255, %c0_256, %c0_257] : memref<4x32x128xf32, #tpu.memory_space<vmem>>, vector<1x32x128xf32>
    %470 = vector.shape_cast %469 : vector<1x32x128xf32> to vector<32x128xf32>
    %471 = arith.mulf %470, %463 : vector<32x128xf32>
    %cst_258 = arith.constant dense<0.000000e+00> : vector<128xf32>
    %472 = vector.multi_reduction <add>, %471, %cst_258 [0] : vector<32x128xf32> to vector<128xf32>
    %473 = vector.shape_cast %472 : vector<128xf32> to vector<1x128xf32>
    %c2_259 = arith.constant 2 : index
    %c0_260 = arith.constant 0 : index
    %c0_261 = arith.constant 0 : index
    %474 = vector.load %arg4[%c2_259, %c0_260, %c0_261] : memref<4x32x128xf32, #tpu.memory_space<vmem>>, vector<1x32x128xf32>
    %475 = vector.shape_cast %474 : vector<1x32x128xf32> to vector<32x128xf32>
    %476 = arith.mulf %475, %463 : vector<32x128xf32>
    %cst_262 = arith.constant dense<0.000000e+00> : vector<128xf32>
    %477 = vector.multi_reduction <add>, %476, %cst_262 [0] : vector<32x128xf32> to vector<128xf32>
    %478 = vector.shape_cast %477 : vector<128xf32> to vector<1x128xf32>
    %c3_263 = arith.constant 3 : index
    %c0_264 = arith.constant 0 : index
    %c0_265 = arith.constant 0 : index
    %479 = vector.load %arg4[%c3_263, %c0_264, %c0_265] : memref<4x32x128xf32, #tpu.memory_space<vmem>>, vector<1x32x128xf32>
    %480 = vector.shape_cast %479 : vector<1x32x128xf32> to vector<32x128xf32>
    %481 = arith.mulf %480, %463 : vector<32x128xf32>
    %cst_266 = arith.constant dense<0.000000e+00> : vector<128xf32>
    %482 = vector.multi_reduction <add>, %481, %cst_266 [0] : vector<32x128xf32> to vector<128xf32>
    %483 = vector.shape_cast %482 : vector<128xf32> to vector<1x128xf32>
    %484 = arith.addf %48, %425 : vector<32x128xf32>
    %c0_267 = arith.constant 0 : index
    %c0_268 = arith.constant 0 : index
    %c0_269 = arith.constant 0 : index
    %485 = vector.load %arg2[%c0_267, %c0_268, %c0_269] : memref<4x32x128xf32, #tpu.memory_space<vmem>>, vector<1x32x128xf32>
    %486 = vector.shape_cast %485 : vector<1x32x128xf32> to vector<32x128xf32>
    %487 = vector.extract_strided_slice %423 {offsets = [4, 0], sizes = [1, 128], strides = [1, 1]} : vector<8x128xf32> to vector<1x128xf32>
    %488 = vector.broadcast %487 : vector<1x128xf32> to vector<32x128xf32>
    %489 = arith.mulf %486, %488 : vector<32x128xf32>
    %490 = arith.addf %484, %489 : vector<32x128xf32>
    %c1_270 = arith.constant 1 : index
    %c0_271 = arith.constant 0 : index
    %c0_272 = arith.constant 0 : index
    %491 = vector.load %arg2[%c1_270, %c0_271, %c0_272] : memref<4x32x128xf32, #tpu.memory_space<vmem>>, vector<1x32x128xf32>
    %492 = vector.shape_cast %491 : vector<1x32x128xf32> to vector<32x128xf32>
    %493 = vector.extract_strided_slice %423 {offsets = [5, 0], sizes = [1, 128], strides = [1, 1]} : vector<8x128xf32> to vector<1x128xf32>
    %494 = vector.broadcast %493 : vector<1x128xf32> to vector<32x128xf32>
    %495 = arith.mulf %492, %494 : vector<32x128xf32>
    %496 = arith.addf %490, %495 : vector<32x128xf32>
    %c2_273 = arith.constant 2 : index
    %c0_274 = arith.constant 0 : index
    %c0_275 = arith.constant 0 : index
    %497 = vector.load %arg2[%c2_273, %c0_274, %c0_275] : memref<4x32x128xf32, #tpu.memory_space<vmem>>, vector<1x32x128xf32>
    %498 = vector.shape_cast %497 : vector<1x32x128xf32> to vector<32x128xf32>
    %499 = vector.extract_strided_slice %423 {offsets = [6, 0], sizes = [1, 128], strides = [1, 1]} : vector<8x128xf32> to vector<1x128xf32>
    %500 = vector.broadcast %499 : vector<1x128xf32> to vector<32x128xf32>
    %501 = arith.mulf %498, %500 : vector<32x128xf32>
    %502 = arith.addf %496, %501 : vector<32x128xf32>
    %c3_276 = arith.constant 3 : index
    %c0_277 = arith.constant 0 : index
    %c0_278 = arith.constant 0 : index
    %503 = vector.load %arg2[%c3_276, %c0_277, %c0_278] : memref<4x32x128xf32, #tpu.memory_space<vmem>>, vector<1x32x128xf32>
    %504 = vector.shape_cast %503 : vector<1x32x128xf32> to vector<32x128xf32>
    %505 = vector.extract_strided_slice %423 {offsets = [7, 0], sizes = [1, 128], strides = [1, 1]} : vector<8x128xf32> to vector<1x128xf32>
    %506 = vector.broadcast %505 : vector<1x128xf32> to vector<32x128xf32>
    %507 = arith.mulf %504, %506 : vector<32x128xf32>
    %508 = arith.addf %502, %507 : vector<32x128xf32>
    %509 = arith.mulf %508, %508 : vector<32x128xf32>
    %510 = arith.mulf %508, %509 : vector<32x128xf32>
    %cst_279 = arith.constant 4.471500e-02 : f32
    %511 = vector.broadcast %cst_279 : f32 to vector<32x128xf32>
    %512 = arith.mulf %511, %510 : vector<32x128xf32>
    %513 = arith.addf %508, %512 : vector<32x128xf32>
    %cst_280 = arith.constant 0.797884583 : f32
    %514 = vector.broadcast %cst_280 : f32 to vector<32x128xf32>
    %515 = arith.mulf %514, %513 : vector<32x128xf32>
    %516 = math.tanh %515 : vector<32x128xf32>
    %cst_281 = arith.constant 1.000000e+00 : f32
    %517 = vector.broadcast %cst_281 : f32 to vector<32x128xf32>
    %518 = arith.addf %517, %516 : vector<32x128xf32>
    %cst_282 = arith.constant 5.000000e-01 : f32
    %519 = vector.broadcast %cst_282 : f32 to vector<32x128xf32>
    %520 = arith.mulf %519, %518 : vector<32x128xf32>
    %521 = arith.mulf %508, %520 : vector<32x128xf32>
    %c0_283 = arith.constant 0 : index
    %c0_284 = arith.constant 0 : index
    %c0_285 = arith.constant 0 : index
    %522 = vector.load %arg4[%c0_283, %c0_284, %c0_285] : memref<4x32x128xf32, #tpu.memory_space<vmem>>, vector<1x32x128xf32>
    %523 = vector.shape_cast %522 : vector<1x32x128xf32> to vector<32x128xf32>
    %524 = arith.mulf %523, %521 : vector<32x128xf32>
    %cst_286 = arith.constant dense<0.000000e+00> : vector<128xf32>
    %525 = vector.multi_reduction <add>, %524, %cst_286 [0] : vector<32x128xf32> to vector<128xf32>
    %526 = vector.shape_cast %525 : vector<128xf32> to vector<1x128xf32>
    %c1_287 = arith.constant 1 : index
    %c0_288 = arith.constant 0 : index
    %c0_289 = arith.constant 0 : index
    %527 = vector.load %arg4[%c1_287, %c0_288, %c0_289] : memref<4x32x128xf32, #tpu.memory_space<vmem>>, vector<1x32x128xf32>
    %528 = vector.shape_cast %527 : vector<1x32x128xf32> to vector<32x128xf32>
    %529 = arith.mulf %528, %521 : vector<32x128xf32>
    %cst_290 = arith.constant dense<0.000000e+00> : vector<128xf32>
    %530 = vector.multi_reduction <add>, %529, %cst_290 [0] : vector<32x128xf32> to vector<128xf32>
    %531 = vector.shape_cast %530 : vector<128xf32> to vector<1x128xf32>
    %c2_291 = arith.constant 2 : index
    %c0_292 = arith.constant 0 : index
    %c0_293 = arith.constant 0 : index
    %532 = vector.load %arg4[%c2_291, %c0_292, %c0_293] : memref<4x32x128xf32, #tpu.memory_space<vmem>>, vector<1x32x128xf32>
    %533 = vector.shape_cast %532 : vector<1x32x128xf32> to vector<32x128xf32>
    %534 = arith.mulf %533, %521 : vector<32x128xf32>
    %cst_294 = arith.constant dense<0.000000e+00> : vector<128xf32>
    %535 = vector.multi_reduction <add>, %534, %cst_294 [0] : vector<32x128xf32> to vector<128xf32>
    %536 = vector.shape_cast %535 : vector<128xf32> to vector<1x128xf32>
    %c3_295 = arith.constant 3 : index
    %c0_296 = arith.constant 0 : index
    %c0_297 = arith.constant 0 : index
    %537 = vector.load %arg4[%c3_295, %c0_296, %c0_297] : memref<4x32x128xf32, #tpu.memory_space<vmem>>, vector<1x32x128xf32>
    %538 = vector.shape_cast %537 : vector<1x32x128xf32> to vector<32x128xf32>
    %539 = arith.mulf %538, %521 : vector<32x128xf32>
    %cst_298 = arith.constant dense<0.000000e+00> : vector<128xf32>
    %540 = vector.multi_reduction <add>, %539, %cst_298 [0] : vector<32x128xf32> to vector<128xf32>
    %541 = vector.shape_cast %540 : vector<128xf32> to vector<1x128xf32>
    %542 = tpu.concatenate %468, %473, %478, %483, %526, %531, %536, %541 in 0 : vector<1x128xf32>, vector<1x128xf32>, vector<1x128xf32>, vector<1x128xf32>, vector<1x128xf32>, vector<1x128xf32>, vector<1x128xf32>, vector<1x128xf32> -> vector<8x128xf32>
    %cst_299 = arith.constant 0.923879504 : f32
    %543 = vector.broadcast %cst_299 : f32 to vector<8x128xf32>
    %544 = arith.mulf %543, %423 : vector<8x128xf32>
    %545 = arith.addf %542, %2 : vector<8x128xf32>
    %cst_300 = arith.constant -0.382683426 : f32
    %546 = vector.broadcast %cst_300 : f32 to vector<8x128xf32>
    %547 = arith.mulf %546, %545 : vector<8x128xf32>
    %548 = arith.addf %544, %547 : vector<8x128xf32>
    %c0_301 = arith.constant 0 : index
    %c0_302 = arith.constant 0 : index
    %549 = vector.load %arg7[%c0_301, %c0_302] : memref<8x128xf32, #tpu.memory_space<vmem>>, vector<8x128xf32>
    tpu.vector_store %arg7[%c0_301, %c0_302], %548 {strides = array<i32>} : memref<8x128xf32, #tpu.memory_space<vmem>>, vector<8x128xf32>,
    return
  }
}

</mosaic_0001>

<llo_original>
// kernel: tpu_custom_call.1
$region0: #{tpu_custom_call.1}
  #allocation0 [shape = 'u32[]', space=smem, size = 0x4, offset = 0x4, fixed_abs, tag = 'smem constant byte address 0x4 - core index']
  #allocation1 [shape = 'u32[144,128]{1,0:T(1,128)}', space=vmem, size = 0x12000, scoped, tag = 'internal scratch']
  %s0 = inlined_call_operand.hbm [shape: f32[8,128], index: 0, kind: input, shape index: {}]
  %s1 = inlined_call_operand.hbm [shape: f32[8,128], index: 1, kind: input, shape index: {}]
  %s2 = inlined_call_operand.hbm [shape: f32[4,32,128], index: 2, kind: input, shape index: {}]
  %s3 = inlined_call_operand.hbm [shape: f32[4,32,128], index: 3, kind: input, shape index: {}]
  %s4 = inlined_call_operand.hbm [shape: f32[4,32,128], index: 4, kind: input, shape index: {}]
  %s5 = inlined_call_operand.hbm [shape: f32[4,32,128], index: 5, kind: input, shape index: {}]
  %s6 = inlined_call_operand.vmem [shape: f32[8,128], index: 6, kind: input, shape index: {}]
  %s7 = inlined_call_operand.hbm [shape: f32[8,128], index: 7, kind: output, shape index: {}]
  %s8 = sld [smem:[#allocation0]]
  $region62: #{tpu_custom_call.1} parent=0
    _
  %s10 = ssub.s32 1, %s8
  %s11 = scalar_select 0, %s10, %s8
  $region1: #{tpu_custom_call.1} parent=0
    #allocation2 [shape = 'u8[4096]{0}', space=vmem, size = 0x1000, scoped, tag = 'input window, operand 0, single buffered']
    #allocation3 [shape = 's32[1]{0}', space=sflag, size = 0x4, scoped, tag = 'scoped memory for tpu_custom_call.1']
    #allocation4 [shape = 's32[1]{0}', space=sflag, size = 0x4, scoped, tag = 'scoped memory for tpu_custom_call.1']
    #allocation5 [shape = 'u8[4096]{0}', space=vmem, size = 0x1000, scoped, tag = 'input window, operand 1, single buffered']
    #allocation6 [shape = 's32[1]{0}', space=sflag, size = 0x4, scoped, tag = 'scoped memory for tpu_custom_call.1']
    #allocation7 [shape = 'u8[65536]{0}', space=vmem, size = 0x10000, scoped, tag = 'input window, operand 2, single buffered']
    #allocation8 [shape = 'u8[65536]{0}', space=vmem, size = 0x10000, scoped, tag = 'input window, operand 3, single buffered']
    #allocation9 [shape = 's32[1]{0}', space=sflag, size = 0x4, scoped, tag = 'scoped memory for tpu_custom_call.1']
    #allocation10 [shape = 'u8[65536]{0}', space=vmem, size = 0x10000, scoped, tag = 'input window, operand 4, single buffered']
    #allocation11 [shape = 'u8[65536]{0}', space=vmem, size = 0x10000, scoped, tag = 'input window, operand 5, single buffered']
    #allocation12 [shape = 's32[1]{0}', space=sflag, size = 0x4, scoped, tag = 'scoped memory for tpu_custom_call.1']
    #allocation13 [shape = 'u8[4096]{0}', space=vmem, size = 0x1000, scoped, tag = 'output window, operand 0, single buffered']
    %12 = vsyncpa [#allocation3], 0
    %13 = vsyncpa [#allocation6], 0
    %14 = vsyncpa [#allocation9], 0
    %15 = vsyncpa [#allocation12], 0
    %16 = vsyncpa [#allocation4], 0
    // Predicated region
    $region2: #{tpu_custom_call.1} parent=1 // pred_check
      _
    $region3: #{tpu_custom_call.1} parent=1 // pred_check_branch
      %18 = sbr.rel (0) target = $region5
    $region4: #{tpu_custom_call.1} parent=1 // pred_region
      %s20 = ssub.s32 128, 128
      %21 = vsyncadd [#allocation3], %s20
      %s23 = sshll.u32 [#allocation2], 4
      %s24 = int_to_ptr.vmem [resolvable:$true] %s23
      %26 = dma.hbm_to_vmem [thread:$0]  %s0, 128, %s24, [#allocation3]
    $region5: #{tpu_custom_call.1} parent=1 // pred_fallthru
      _
    // Predicated region
    $region6: #{tpu_custom_call.1} parent=1 // pred_check
      _
    $region7: #{tpu_custom_call.1} parent=1 // pred_check_branch
      %28 = sbr.rel (0) target = $region9
    $region8: #{tpu_custom_call.1} parent=1 // pred_region
      %s30 = ssub.s32 128, 128
      %31 = vsyncadd [#allocation6], %s30
      %s33 = sshll.u32 [#allocation5], 4
      %s34 = int_to_ptr.vmem [resolvable:$true] %s33
      %36 = dma.hbm_to_vmem [thread:$0]  %s1, 128, %s34, [#allocation6]
    $region9: #{tpu_custom_call.1} parent=1 // pred_fallthru
      _
    // Predicated region
    $region10: #{tpu_custom_call.1} parent=1 // pred_check
      _
    $region11: #{tpu_custom_call.1} parent=1 // pred_check_branch
      %38 = sbr.rel (0) target = $region13
    $region12: #{tpu_custom_call.1} parent=1 // pred_region
      %s40 = ssub.s32 2048, 2048
      %41 = vsyncadd [#allocation6], %s40
      %s42 = sshll.u32 [#allocation7], 4
      %s43 = int_to_ptr.vmem [resolvable:$true] %s42
      %48 = dma.hbm_to_vmem [thread:$0]  %s2, 2048, %s43, [#allocation6], 128, 128, 8
    $region13: #{tpu_custom_call.1} parent=1 // pred_fallthru
      _
    // Predicated region
    $region14: #{tpu_custom_call.1} parent=1 // pred_check
      _
    $region15: #{tpu_custom_call.1} parent=1 // pred_check_branch
      %50 = sbr.rel (0) target = $region17
    $region16: #{tpu_custom_call.1} parent=1 // pred_region
      %s52 = ssub.s32 2048, 2048
      %53 = vsyncadd [#allocation9], %s52
      %s54 = sshll.u32 [#allocation8], 4
      %s55 = int_to_ptr.vmem [resolvable:$true] %s54
      %60 = dma.hbm_to_vmem [thread:$0]  %s3, 2048, %s55, [#allocation9], 128, 128, 8
    $region17: #{tpu_custom_call.1} parent=1 // pred_fallthru
      _
    // Predicated region
    $region18: #{tpu_custom_call.1} parent=1 // pred_check
      _
    $region19: #{tpu_custom_call.1} parent=1 // pred_check_branch
      %62 = sbr.rel (0) target = $region21
    $region20: #{tpu_custom_call.1} parent=1 // pred_region
      %s64 = ssub.s32 2048, 2048
      %65 = vsyncadd [#allocation9], %s64
      %s66 = sshll.u32 [#allocation10], 4
      %s67 = int_to_ptr.vmem [resolvable:$true] %s66
      %72 = dma.hbm_to_vmem [thread:$0]  %s4, 2048, %s67, [#allocation9], 128, 128, 8
    $region21: #{tpu_custom_call.1} parent=1 // pred_fallthru
      _
    // Predicated region
    $region22: #{tpu_custom_call.1} parent=1 // pred_check
      _
    $region23: #{tpu_custom_call.1} parent=1 // pred_check_branch
      %74 = sbr.rel (0) target = $region25
    $region24: #{tpu_custom_call.1} parent=1 // pred_region
      %s76 = ssub.s32 2048, 2048
      %77 = vsyncadd [#allocation12], %s76
      %s78 = sshll.u32 [#allocation11], 4
      %s79 = int_to_ptr.vmem [resolvable:$true] %s78
      %84 = dma.hbm_to_vmem [thread:$0]  %s5, 2048, %s79, [#allocation12], 128, 128, 8
    $region25: #{tpu_custom_call.1} parent=1 // pred_fallthru
      _
    // Predicated region
    $region26: #{tpu_custom_call.1} parent=1 // pred_check
      _
    $region27: #{tpu_custom_call.1} parent=1 // pred_check_branch
      %86 = sbr.rel (0) target = $region29
    $region28: #{tpu_custom_call.1} parent=1 // pred_region
      _
    $region29: #{tpu_custom_call.1} parent=1 // pred_fallthru
      _
    // Predicated region
    $region30: #{tpu_custom_call.1} parent=1 // pred_check
      _
    $region31: #{tpu_custom_call.1} parent=1 // pred_check_branch
      %88 = sbr.rel (0) target = $region33
    $region32: #{tpu_custom_call.1} parent=1 // pred_region
      %89 = dma.done [#allocation3], 128
    $region33: #{tpu_custom_call.1} parent=1 // pred_fallthru
      _
    // Predicated region
    $region34: #{tpu_custom_call.1} parent=1 // pred_check
      _
    $region35: #{tpu_custom_call.1} parent=1 // pred_check_branch
      %91 = sbr.rel (0) target = $region37
    $region36: #{tpu_custom_call.1} parent=1 // pred_region
      %92 = dma.done [#allocation6], 128
    $region37: #{tpu_custom_call.1} parent=1 // pred_fallthru
      _
    // Predicated region
    $region38: #{tpu_custom_call.1} parent=1 // pred_check
      _
    $region39: #{tpu_custom_call.1} parent=1 // pred_check_branch
      %94 = sbr.rel (0) target = $region41
    $region40: #{tpu_custom_call.1} parent=1 // pred_region
      %95 = dma.done [#allocation6], 2048
    $region41: #{tpu_custom_call.1} parent=1 // pred_fallthru
      _
    // Predicated region
    $region42: #{tpu_custom_call.1} parent=1 // pred_check
      _
    $region43: #{tpu_custom_call.1} parent=1 // pred_check_branch
      %97 = sbr.rel (0) target = $region45
    $region44: #{tpu_custom_call.1} parent=1 // pred_region
      %98 = dma.done [#allocation9], 2048
    $region45: #{tpu_custom_call.1} parent=1 // pred_fallthru
      _
    // Predicated region
    $region46: #{tpu_custom_call.1} parent=1 // pred_check
      _
    $region47: #{tpu_custom_call.1} parent=1 // pred_check_branch
      %100 = sbr.rel (0) target = $region49
    $region48: #{tpu_custom_call.1} parent=1 // pred_region
      %101 = dma.done [#allocation9], 2048
    $region49: #{tpu_custom_call.1} parent=1 // pred_fallthru
      _
    // Predicated region
    $region50: #{tpu_custom_call.1} parent=1 // pred_check
      _
    $region51: #{tpu_custom_call.1} parent=1 // pred_check_branch
      %103 = sbr.rel (0) target = $region53
    $region52: #{tpu_custom_call.1} parent=1 // pred_region
      %104 = dma.done [#allocation12], 2048
    $region53: #{tpu_custom_call.1} parent=1 // pred_fallthru
      _
    %v105 = vld [vmem:[#allocation2] sm:$0xff]
    %v106 = vld [vmem:[#allocation5] sm:$0xff]
    %v107 = vld [vmem:[%s6] sm:$0xff]
    %v108 = vld [vmem:[#allocation8] sm:$0xff]
    %v109 = vld [vmem:[#allocation8 + $0x8] sm:$0xff]
    %v110 = vld [vmem:[#allocation8 + $0x10] sm:$0xff]
    %v111 = vld [vmem:[#allocation8 + $0x18] sm:$0xff]
    %v112 = vlaneseq
    %v113 = vshrl.u32 %v112, 7
    %v114 = vsub.s32 0, %v113
    %v115 = vrot.slane %v106, %v114
    %v116 = vmul.f32 %v108, %v115
    %v117 = vmul.f32 %v109, %v115
    %v118 = vmul.f32 %v110, %v115
    %v119 = vmul.f32 %v111, %v115
    %s120 = scalar_lea.vmem [#allocation8], 32
    %v121 = vld [vmem:[%s120] sm:$0xff]
    %v122 = vld [vmem:[%s120 + $0x8] sm:$0xff]
    %v123 = vld [vmem:[%s120 + $0x10] sm:$0xff]
    %v124 = vld [vmem:[%s120 + $0x18] sm:$0xff]
    %v125 = vlaneseq
    %v126 = vshrl.u32 %v125, 7
    %v127 = vsub.s32 1, %v126
    %v128 = vrot.slane %v106, %v127
    %v129 = vmul.f32 %v121, %v128
    %v130 = vmul.f32 %v122, %v128
    %v131 = vmul.f32 %v123, %v128
    %v132 = vmul.f32 %v124, %v128
    %v133 = vadd.f32 %v116, %v129
    %v134 = vadd.f32 %v117, %v130
    %v135 = vadd.f32 %v118, %v131
    %v136 = vadd.f32 %v119, %v132
    %s137 = scalar_lea.vmem [#allocation8], 64
    %v138 = vld [vmem:[%s137] sm:$0xff]
    %v139 = vld [vmem:[%s137 + $0x8] sm:$0xff]
    %v140 = vld [vmem:[%s137 + $0x10] sm:$0xff]
    %v141 = vld [vmem:[%s137 + $0x18] sm:$0xff]
    %v142 = vlaneseq
    %v143 = vshrl.u32 %v142, 7
    %v144 = vsub.s32 2, %v143
    %v145 = vrot.slane %v106, %v144
    %v146 = vmul.f32 %v138, %v145
    %v147 = vmul.f32 %v139, %v145
    %v148 = vmul.f32 %v140, %v145
    %v149 = vmul.f32 %v141, %v145
    %v150 = vadd.f32 %v133, %v146
    %v151 = vadd.f32 %v134, %v147
    %v152 = vadd.f32 %v135, %v148
    %v153 = vadd.f32 %v136, %v149
    %s154 = scalar_lea.vmem [#allocation8], 96
    %v155 = vld [vmem:[%s154] sm:$0xff]
    %v156 = vld [vmem:[%s154 + $0x8] sm:$0xff]
    %v157 = vld [vmem:[%s154 + $0x10] sm:$0xff]
    %v158 = vld [vmem:[%s154 + $0x18] sm:$0xff]
    %v159 = vlaneseq
    %v160 = vshrl.u32 %v159, 7
    %v161 = vsub.s32 3, %v160
    %v162 = vrot.slane %v106, %v161
    %v163 = vmul.f32 %v155, %v162
    %v164 = vmul.f32 %v156, %v162
    %v165 = vmul.f32 %v157, %v162
    %v166 = vmul.f32 %v158, %v162
    %v167 = vadd.f32 %v150, %v163
    %v168 = vadd.f32 %v151, %v164
    %v169 = vadd.f32 %v152, %v165
    %v170 = vadd.f32 %v153, %v166
    %v171 = vlaneseq
    %v172 = vshrl.u32 %v171, 7
    %v173 = vsub.s32 4, %v172
    %v174 = vrot.slane %v106, %v173
    %v175 = vmul.f32 %v108, %v174
    %v176 = vmul.f32 %v109, %v174
    %v177 = vmul.f32 %v110, %v174
    %v178 = vmul.f32 %v111, %v174
    %v179 = vlaneseq
    %v180 = vshrl.u32 %v179, 7
    %v181 = vsub.s32 5, %v180
    %v182 = vrot.slane %v106, %v181
    %v183 = vmul.f32 %v121, %v182
    %v184 = vmul.f32 %v122, %v182
    %v185 = vmul.f32 %v123, %v182
    %v186 = vmul.f32 %v124, %v182
    %v187 = vadd.f32 %v175, %v183
    %v188 = vadd.f32 %v176, %v184
    %v189 = vadd.f32 %v177, %v185
    %v190 = vadd.f32 %v178, %v186
    %v191 = vlaneseq
    %v192 = vshrl.u32 %v191, 7
    %v193 = vsub.s32 6, %v192
    %v194 = vrot.slane %v106, %v193
    %v195 = vmul.f32 %v138, %v194
    %v196 = vmul.f32 %v139, %v194
    %v197 = vmul.f32 %v140, %v194
    %v198 = vmul.f32 %v141, %v194
    %v199 = vadd.f32 %v187, %v195
    %v200 = vadd.f32 %v188, %v196
    %v201 = vadd.f32 %v189, %v197
    %v202 = vadd.f32 %v190, %v198
    %v203 = vlaneseq
    %v204 = vshrl.u32 %v203, 7
    %v205 = vsub.s32 7, %v204
    %v206 = vrot.slane %v106, %v205
    %v207 = vmul.f32 %v155, %v206
    %v208 = vmul.f32 %v156, %v206
    %v209 = vmul.f32 %v157, %v206
    %v210 = vmul.f32 %v158, %v206
    %v211 = vadd.f32 %v199, %v207
    %v212 = vadd.f32 %v200, %v208
    %v213 = vadd.f32 %v201, %v209
    %v214 = vadd.f32 %v202, %v210
    %v215 = vld [vmem:[#allocation11] sm:$0xff]
    %v216 = vld [vmem:[#allocation11 + $0x8] sm:$0xff]
    %v217 = vld [vmem:[#allocation11 + $0x10] sm:$0xff]
    %v218 = vld [vmem:[#allocation11 + $0x18] sm:$0xff]
    %v219 = vadd.f32 %v167, %v215
    %v220 = vadd.f32 %v168, %v216
    %v221 = vadd.f32 %v169, %v217
    %v222 = vadd.f32 %v170, %v218
    %v223 = vld [vmem:[#allocation7] sm:$0xff]
    %v224 = vld [vmem:[#allocation7 + $0x8] sm:$0xff]
    %v225 = vld [vmem:[#allocation7 + $0x10] sm:$0xff]
    %v226 = vld [vmem:[#allocation7 + $0x18] sm:$0xff]
    %v227 = vlaneseq
    %v228 = vshrl.u32 %v227, 7
    %v229 = vsub.s32 0, %v228
    %v230 = vrot.slane %v105, %v229
    %v231 = vmul.f32 %v223, %v230
    %v232 = vmul.f32 %v224, %v230
    %v233 = vmul.f32 %v225, %v230
    %v234 = vmul.f32 %v226, %v230
    %v235 = vadd.f32 %v219, %v231
    %v236 = vadd.f32 %v220, %v232
    %v237 = vadd.f32 %v221, %v233
    %v238 = vadd.f32 %v222, %v234
    %s239 = scalar_lea.vmem [#allocation7], 32
    %v240 = vld [vmem:[%s239] sm:$0xff]
    %v241 = vld [vmem:[%s239 + $0x8] sm:$0xff]
    %v242 = vld [vmem:[%s239 + $0x10] sm:$0xff]
    %v243 = vld [vmem:[%s239 + $0x18] sm:$0xff]
    %v244 = vlaneseq
    %v245 = vshrl.u32 %v244, 7
    %v246 = vsub.s32 1, %v245
    %v247 = vrot.slane %v105, %v246
    %v248 = vmul.f32 %v240, %v247
    %v249 = vmul.f32 %v241, %v247
    %v250 = vmul.f32 %v242, %v247
    %v251 = vmul.f32 %v243, %v247
    %v252 = vadd.f32 %v235, %v248
    %v253 = vadd.f32 %v236, %v249
    %v254 = vadd.f32 %v237, %v250
    %v255 = vadd.f32 %v238, %v251
    %s256 = scalar_lea.vmem [#allocation7], 64
    %v257 = vld [vmem:[%s256] sm:$0xff]
    %v258 = vld [vmem:[%s256 + $0x8] sm:$0xff]
    %v259 = vld [vmem:[%s256 + $0x10] sm:$0xff]
    %v260 = vld [vmem:[%s256 + $0x18] sm:$0xff]
    %v261 = vlaneseq
    %v262 = vshrl.u32 %v261, 7
    %v263 = vsub.s32 2, %v262
    %v264 = vrot.slane %v105, %v263
    %v265 = vmul.f32 %v257, %v264
    %v266 = vmul.f32 %v258, %v264
    %v267 = vmul.f32 %v259, %v264
    %v268 = vmul.f32 %v260, %v264
    %v269 = vadd.f32 %v252, %v265
    %v270 = vadd.f32 %v253, %v266
    %v271 = vadd.f32 %v254, %v267
    %v272 = vadd.f32 %v255, %v268
    %s273 = scalar_lea.vmem [#allocation7], 96
    %v274 = vld [vmem:[%s273] sm:$0xff]
    %v275 = vld [vmem:[%s273 + $0x8] sm:$0xff]
    %v276 = vld [vmem:[%s273 + $0x10] sm:$0xff]
    %v277 = vld [vmem:[%s273 + $0x18] sm:$0xff]
    %v278 = vlaneseq
    %v279 = vshrl.u32 %v278, 7
    %v280 = vsub.s32 3, %v279
    %v281 = vrot.slane %v105, %v280
    %v282 = vmul.f32 %v274, %v281
    %v283 = vmul.f32 %v275, %v281
    %v284 = vmul.f32 %v276, %v281
    %v285 = vmul.f32 %v277, %v281
    %v286 = vadd.f32 %v269, %v282
    %v287 = vadd.f32 %v270, %v283
    %v288 = vadd.f32 %v271, %v284
    %v289 = vadd.f32 %v272, %v285
    %v290 = vmul.f32 %v286, %v286
    %v291 = vmul.f32 %v287, %v287
    %v292 = vmul.f32 %v288, %v288
    %v293 = vmul.f32 %v289, %v289
    %v294 = vmul.f32 %v286, %v290
    %v295 = vmul.f32 %v287, %v291
    %v296 = vmul.f32 %v288, %v292
    %v297 = vmul.f32 %v289, %v293
    %v298 = vmul.f32 %v294, 0.044715
    %v299 = vmul.f32 %v295, 0.044715
    %v300 = vmul.f32 %v296, 0.044715
    %v301 = vmul.f32 %v297, 0.044715
    %v302 = vadd.f32 %v286, %v298
    %v303 = vadd.f32 %v287, %v299
    %v304 = vadd.f32 %v288, %v300
    %v305 = vadd.f32 %v289, %v301
    %v306 = vmul.f32 %v302, 0.7978846
    %v307 = vmul.f32 %v303, 0.7978846
    %v308 = vmul.f32 %v304, 0.7978846
    %v309 = vmul.f32 %v305, 0.7978846
    %v310 = vtanh.pop %v306
    %v311 = vtanh.pop %v307
    %v312 = vtanh.pop %v308
    %v313 = vtanh.pop %v309
    %v314 = vadd.f32 %v310, 1.0
    %v315 = vadd.f32 %v311, 1.0
    %v316 = vadd.f32 %v312, 1.0
    %v317 = vadd.f32 %v313, 1.0
    %v318 = vmul.f32 %v314, 0.5
    %v319 = vmul.f32 %v315, 0.5
    %v320 = vmul.f32 %v316, 0.5
    %v321 = vmul.f32 %v317, 0.5
    %v322 = vmul.f32 %v286, %v318
    %v323 = vmul.f32 %v287, %v319
    %v324 = vmul.f32 %v288, %v320
    %v325 = vmul.f32 %v289, %v321
    %v326 = vld [vmem:[#allocation10] sm:$0xff]
    %v327 = vld [vmem:[#allocation10 + $0x8] sm:$0xff]
    %v328 = vld [vmem:[#allocation10 + $0x10] sm:$0xff]
    %v329 = vld [vmem:[#allocation10 + $0x18] sm:$0xff]
    %v330 = vmul.f32 %v326, %v322
    %v331 = vmul.f32 %v327, %v323
    %v332 = vmul.f32 %v328, %v324
    %v333 = vmul.f32 %v329, %v325
    %v334 = vadd.f32 %v330, %v331
    %v335 = vadd.f32 %v334, %v332
    %v336 = vadd.f32 %v335, %v333
    %v337 = vrot.slane %v336, 4
    %v338 = vadd.f32 %v336, %v337
    %v339 = vrot.slane %v338, 2
    %v340 = vadd.f32 %v338, %v339
    %v341 = vrot.slane %v340, 1
    %v342 = vadd.f32 %v340, %v341
    %s343 = scalar_lea.vmem [#allocation10], 32
    %v344 = vld [vmem:[%s343] sm:$0xff]
    %v345 = vld [vmem:[%s343 + $0x8] sm:$0xff]
    %v346 = vld [vmem:[%s343 + $0x10] sm:$0xff]
    %v347 = vld [vmem:[%s343 + $0x18] sm:$0xff]
    %v348 = vmul.f32 %v344, %v322
    %v349 = vmul.f32 %v345, %v323
    %v350 = vmul.f32 %v346, %v324
    %v351 = vmul.f32 %v347, %v325
    %v352 = vadd.f32 %v348, %v349
    %v353 = vadd.f32 %v352, %v350
    %v354 = vadd.f32 %v353, %v351
    %v355 = vrot.slane %v354, 4
    %v356 = vadd.f32 %v354, %v355
    %v357 = vrot.slane %v356, 2
    %v358 = vadd.f32 %v356, %v357
    %v359 = vrot.slane %v358, 1
    %v360 = vadd.f32 %v358, %v359
    %s361 = scalar_lea.vmem [#allocation10], 64
    %v362 = vld [vmem:[%s361] sm:$0xff]
    %v363 = vld [vmem:[%s361 + $0x8] sm:$0xff]
    %v364 = vld [vmem:[%s361 + $0x10] sm:$0xff]
    %v365 = vld [vmem:[%s361 + $0x18] sm:$0xff]
    %v366 = vmul.f32 %v362, %v322
    %v367 = vmul.f32 %v363, %v323
    %v368 = vmul.f32 %v364, %v324
    %v369 = vmul.f32 %v365, %v325
    %v370 = vadd.f32 %v366, %v367
    %v371 = vadd.f32 %v370, %v368
    %v372 = vadd.f32 %v371, %v369
    %v373 = vrot.slane %v372, 4
    %v374 = vadd.f32 %v372, %v373
    %v375 = vrot.slane %v374, 2
    %v376 = vadd.f32 %v374, %v375
    %v377 = vrot.slane %v376, 1
    %v378 = vadd.f32 %v376, %v377
    %s379 = scalar_lea.vmem [#allocation10], 96
    %v380 = vld [vmem:[%s379] sm:$0xff]
    %v381 = vld [vmem:[%s379 + $0x8] sm:$0xff]
    %v382 = vld [vmem:[%s379 + $0x10] sm:$0xff]
    %v383 = vld [vmem:[%s379 + $0x18] sm:$0xff]
    %v384 = vmul.f32 %v380, %v322
    %v385 = vmul.f32 %v381, %v323
    %v386 = vmul.f32 %v382, %v324
    %v387 = vmul.f32 %v383, %v325
    %v388 = vadd.f32 %v384, %v385
    %v389 = vadd.f32 %v388, %v386
    %v390 = vadd.f32 %v389, %v387
    %v391 = vrot.slane %v390, 4
    %v392 = vadd.f32 %v390, %v391
    %v393 = vrot.slane %v392, 2
    %v394 = vadd.f32 %v392, %v393
    %v395 = vrot.slane %v394, 1
    %v396 = vadd.f32 %v394, %v395
    %v397 = vadd.f32 %v211, %v215
    %v398 = vadd.f32 %v212, %v216
    %v399 = vadd.f32 %v213, %v217
    %v400 = vadd.f32 %v214, %v218
    %v401 = vlaneseq
    %v402 = vshrl.u32 %v401, 7
    %v403 = vsub.s32 4, %v402
    %v404 = vrot.slane %v105, %v403
    %v405 = vmul.f32 %v223, %v404
    %v406 = vmul.f32 %v224, %v404
    %v407 = vmul.f32 %v225, %v404
    %v408 = vmul.f32 %v226, %v404
    %v409 = vadd.f32 %v397, %v405
    %v410 = vadd.f32 %v398, %v406
    %v411 = vadd.f32 %v399, %v407
    %v412 = vadd.f32 %v400, %v408
    %v413 = vlaneseq
    %v414 = vshrl.u32 %v413, 7
    %v415 = vsub.s32 5, %v414
    %v416 = vrot.slane %v105, %v415
    %v417 = vmul.f32 %v240, %v416
    %v418 = vmul.f32 %v241, %v416
    %v419 = vmul.f32 %v242, %v416
    %v420 = vmul.f32 %v243, %v416
    %v421 = vadd.f32 %v409, %v417
    %v422 = vadd.f32 %v410, %v418
    %v423 = vadd.f32 %v411, %v419
    %v424 = vadd.f32 %v412, %v420
    %v425 = vlaneseq
    %v426 = vshrl.u32 %v425, 7
    %v427 = vsub.s32 6, %v426
    %v428 = vrot.slane %v105, %v427
    %v429 = vmul.f32 %v257, %v428
    %v430 = vmul.f32 %v258, %v428
    %v431 = vmul.f32 %v259, %v428
    %v432 = vmul.f32 %v260, %v428
    %v433 = vadd.f32 %v421, %v429
    %v434 = vadd.f32 %v422, %v430
    %v435 = vadd.f32 %v423, %v431
    %v436 = vadd.f32 %v424, %v432
    %v437 = vlaneseq
    %v438 = vshrl.u32 %v437, 7
    %v439 = vsub.s32 7, %v438
    %v440 = vrot.slane %v105, %v439
    %v441 = vmul.f32 %v274, %v440
    %v442 = vmul.f32 %v275, %v440
    %v443 = vmul.f32 %v276, %v440
    %v444 = vmul.f32 %v277, %v440
    %v445 = vadd.f32 %v433, %v441
    %v446 = vadd.f32 %v434, %v442
    %v447 = vadd.f32 %v435, %v443
    %v448 = vadd.f32 %v436, %v444
    %v449 = vmul.f32 %v445, %v445
    %v450 = vmul.f32 %v446, %v446
    %v451 = vmul.f32 %v447, %v447
    %v452 = vmul.f32 %v448, %v448
    %v453 = vmul.f32 %v445, %v449
    %v454 = vmul.f32 %v446, %v450
    %v455 = vmul.f32 %v447, %v451
    %v456 = vmul.f32 %v448, %v452
    %v457 = vmul.f32 %v453, 0.044715
    %v458 = vmul.f32 %v454, 0.044715
    %v459 = vmul.f32 %v455, 0.044715
    %v460 = vmul.f32 %v456, 0.044715
    %v461 = vadd.f32 %v445, %v457
    %v462 = vadd.f32 %v446, %v458
    %v463 = vadd.f32 %v447, %v459
    %v464 = vadd.f32 %v448, %v460
    %v465 = vmul.f32 %v461, 0.7978846
    %v466 = vmul.f32 %v462, 0.7978846
    %v467 = vmul.f32 %v463, 0.7978846
    %v468 = vmul.f32 %v464, 0.7978846
    %v469 = vtanh.pop %v465
    %v470 = vtanh.pop %v466
    %v471 = vtanh.pop %v467
    %v472 = vtanh.pop %v468
    %v473 = vadd.f32 %v469, 1.0
    %v474 = vadd.f32 %v470, 1.0
    %v475 = vadd.f32 %v471, 1.0
    %v476 = vadd.f32 %v472, 1.0
    %v477 = vmul.f32 %v473, 0.5
    %v478 = vmul.f32 %v474, 0.5
    %v479 = vmul.f32 %v475, 0.5
    %v480 = vmul.f32 %v476, 0.5
    %v481 = vmul.f32 %v445, %v477
    %v482 = vmul.f32 %v446, %v478
    %v483 = vmul.f32 %v447, %v479
    %v484 = vmul.f32 %v448, %v480
    %v485 = vmul.f32 %v326, %v481
    %v486 = vmul.f32 %v327, %v482
    %v487 = vmul.f32 %v328, %v483
    %v488 = vmul.f32 %v329, %v484
    %v489 = vadd.f32 %v485, %v486
    %v490 = vadd.f32 %v489, %v487
    %v491 = vadd.f32 %v490, %v488
    %v492 = vrot.slane %v491, 4
    %v493 = vadd.f32 %v491, %v492
    %v494 = vrot.slane %v493, 2
    %v495 = vadd.f32 %v493, %v494
    %v496 = vrot.slane %v495, 1
    %v497 = vadd.f32 %v495, %v496
    %v498 = vmul.f32 %v344, %v481
    %v499 = vmul.f32 %v345, %v482
    %v500 = vmul.f32 %v346, %v483
    %v501 = vmul.f32 %v347, %v484
    %v502 = vadd.f32 %v498, %v499
    %v503 = vadd.f32 %v502, %v500
    %v504 = vadd.f32 %v503, %v501
    %v505 = vrot.slane %v504, 4
    %v506 = vadd.f32 %v504, %v505
    %v507 = vrot.slane %v506, 2
    %v508 = vadd.f32 %v506, %v507
    %v509 = vrot.slane %v508, 1
    %v510 = vadd.f32 %v508, %v509
    %v511 = vmul.f32 %v362, %v481
    %v512 = vmul.f32 %v363, %v482
    %v513 = vmul.f32 %v364, %v483
    %v514 = vmul.f32 %v365, %v484
    %v515 = vadd.f32 %v511, %v512
    %v516 = vadd.f32 %v515, %v513
    %v517 = vadd.f32 %v516, %v514
    %v518 = vrot.slane %v517, 4
    %v519 = vadd.f32 %v517, %v518
    %v520 = vrot.slane %v519, 2
    %v521 = vadd.f32 %v519, %v520
    %v522 = vrot.slane %v521, 1
    %v523 = vadd.f32 %v521, %v522
    %v524 = vmul.f32 %v380, %v481
    %v525 = vmul.f32 %v381, %v482
    %v526 = vmul.f32 %v382, %v483
    %v527 = vmul.f32 %v383, %v484
    %v528 = vadd.f32 %v524, %v525
    %v529 = vadd.f32 %v528, %v526
    %v530 = vadd.f32 %v529, %v527
    %v531 = vrot.slane %v530, 4
    %v532 = vadd.f32 %v530, %v531
    %v533 = vrot.slane %v532, 2
    %v534 = vadd.f32 %v532, %v533
    %v535 = vrot.slane %v534, 1
    %v536 = vadd.f32 %v534, %v535
    %vm537 = vcmask 1040384
    %v538 = vsel %vm537, %v342, %v360
    %vm539 = vcmask 1041408
    %v540 = vsel %vm539, %v538, %v378
    %vm541 = vcmask 1042432
    %v542 = vsel %vm541, %v540, %v396
    %vm543 = vcmask 1043456
    %v544 = vsel %vm543, %v542, %v497
    %vm545 = vcmask 1044480
    %v546 = vsel %vm545, %v544, %v510
    %vm547 = vcmask 1045504
    %v548 = vsel %vm547, %v546, %v523
    %vm549 = vcmask 1046528
    %v550 = vsel %vm549, %v548, %v536
    %v551 = vmul.f32 %v105, 0.9238795
    %v552 = vadd.f32 %v550, %v107
    %v553 = vmul.f32 %v552, -0.38268343
    %v554 = vadd.f32 %v551, %v553
    %s555 = scalar_lea.vmem [#allocation11], 32
    %v556 = vld [vmem:[%s555] sm:$0xff]
    %v557 = vld [vmem:[%s555 + $0x8] sm:$0xff]
    %v558 = vld [vmem:[%s555 + $0x10] sm:$0xff]
    %v559 = vld [vmem:[%s555 + $0x18] sm:$0xff]
    %v560 = vadd.f32 %v167, %v556
    %v561 = vadd.f32 %v168, %v557
    %v562 = vadd.f32 %v169, %v558
    %v563 = vadd.f32 %v170, %v559
    %v564 = vlaneseq
    %v565 = vshrl.u32 %v564, 7
    %v566 = vsub.s32 0, %v565
    %v567 = vrot.slane %v554, %v566
    %v568 = vmul.f32 %v223, %v567
    %v569 = vmul.f32 %v224, %v567
    %v570 = vmul.f32 %v225, %v567
    %v571 = vmul.f32 %v226, %v567
    %v572 = vadd.f32 %v560, %v568
    %v573 = vadd.f32 %v561, %v569
    %v574 = vadd.f32 %v562, %v570
    %v575 = vadd.f32 %v563, %v571
    %v576 = vlaneseq
    %v577 = vshrl.u32 %v576, 7
    %v578 = vsub.s32 1, %v577
    %v579 = vrot.slane %v554, %v578
    %v580 = vmul.f32 %v240, %v579
    %v581 = vmul.f32 %v241, %v579
    %v582 = vmul.f32 %v242, %v579
    %v583 = vmul.f32 %v243, %v579
    %v584 = vadd.f32 %v572, %v580
    %v585 = vadd.f32 %v573, %v581
    %v586 = vadd.f32 %v574, %v582
    %v587 = vadd.f32 %v575, %v583
    %v588 = vlaneseq
    %v589 = vshrl.u32 %v588, 7
    %v590 = vsub.s32 2, %v589
    %v591 = vrot.slane %v554, %v590
    %v592 = vmul.f32 %v257, %v591
    %v593 = vmul.f32 %v258, %v591
    %v594 = vmul.f32 %v259, %v591
    %v595 = vmul.f32 %v260, %v591
    %v596 = vadd.f32 %v584, %v592
    %v597 = vadd.f32 %v585, %v593
    %v598 = vadd.f32 %v586, %v594
    %v599 = vadd.f32 %v587, %v595
    %v600 = vlaneseq
    %v601 = vshrl.u32 %v600, 7
    %v602 = vsub.s32 3, %v601
    %v603 = vrot.slane %v554, %v602
    %v604 = vmul.f32 %v274, %v603
    %v605 = vmul.f32 %v275, %v603
    %v606 = vmul.f32 %v276, %v603
    %v607 = vmul.f32 %v277, %v603
    %v608 = vadd.f32 %v596, %v604
    %v609 = vadd.f32 %v597, %v605
    %v610 = vadd.f32 %v598, %v606
    %v611 = vadd.f32 %v599, %v607
    %v612 = vmul.f32 %v608, %v608
    %v613 = vmul.f32 %v609, %v609
    %v614 = vmul.f32 %v610, %v610
    %v615 = vmul.f32 %v611, %v611
    %v616 = vmul.f32 %v608, %v612
    %v617 = vmul.f32 %v609, %v613
    %v618 = vmul.f32 %v610, %v614
    %v619 = vmul.f32 %v611, %v615
    %v620 = vmul.f32 %v616, 0.044715
    %v621 = vmul.f32 %v617, 0.044715
    %v622 = vmul.f32 %v618, 0.044715
    %v623 = vmul.f32 %v619, 0.044715
    %v624 = vadd.f32 %v608, %v620
    %v625 = vadd.f32 %v609, %v621
    %v626 = vadd.f32 %v610, %v622
    %v627 = vadd.f32 %v611, %v623
    %v628 = vmul.f32 %v624, 0.7978846
    %v629 = vmul.f32 %v625, 0.7978846
    %v630 = vmul.f32 %v626, 0.7978846
    %v631 = vmul.f32 %v627, 0.7978846
    %v632 = vtanh.pop %v628
    %v633 = vtanh.pop %v629
    %v634 = vtanh.pop %v630
    %v635 = vtanh.pop %v631
    %v636 = vadd.f32 %v632, 1.0
    %v637 = vadd.f32 %v633, 1.0
    %v638 = vadd.f32 %v634, 1.0
    %v639 = vadd.f32 %v635, 1.0
    %v640 = vmul.f32 %v636, 0.5
    %v641 = vmul.f32 %v637, 0.5
    %v642 = vmul.f32 %v638, 0.5
    %v643 = vmul.f32 %v639, 0.5
    %v644 = vmul.f32 %v608, %v640
    %v645 = vmul.f32 %v609, %v641
    %v646 = vmul.f32 %v610, %v642
    %v647 = vmul.f32 %v611, %v643
    %v648 = vmul.f32 %v326, %v644
    %v649 = vmul.f32 %v327, %v645
    %v650 = vmul.f32 %v328, %v646
    %v651 = vmul.f32 %v329, %v647
    %v652 = vadd.f32 %v648, %v649
    %v653 = vadd.f32 %v652, %v650
    %v654 = vadd.f32 %v653, %v651
    %v655 = vrot.slane %v654, 4
    %v656 = vadd.f32 %v654, %v655
    %v657 = vrot.slane %v656, 2
    %v658 = vadd.f32 %v656, %v657
    %v659 = vrot.slane %v658, 1
    %v660 = vadd.f32 %v658, %v659
    %v661 = vmul.f32 %v344, %v644
    %v662 = vmul.f32 %v345, %v645
    %v663 = vmul.f32 %v346, %v646
    %v664 = vmul.f32 %v347, %v647
    %v665 = vadd.f32 %v661, %v662
    %v666 = vadd.f32 %v665, %v663
    %v667 = vadd.f32 %v666, %v664
    %v668 = vrot.slane %v667, 4
    %v669 = vadd.f32 %v667, %v668
    %v670 = vrot.slane %v669, 2
    %v671 = vadd.f32 %v669, %v670
    %v672 = vrot.slane %v671, 1
    %v673 = vadd.f32 %v671, %v672
    %v674 = vmul.f32 %v362, %v644
    %v675 = vmul.f32 %v363, %v645
    %v676 = vmul.f32 %v364, %v646
    %v677 = vmul.f32 %v365, %v647
    %v678 = vadd.f32 %v674, %v675
    %v679 = vadd.f32 %v678, %v676
    %v680 = vadd.f32 %v679, %v677
    %v681 = vrot.slane %v680, 4
    %v682 = vadd.f32 %v680, %v681
    %v683 = vrot.slane %v682, 2
    %v684 = vadd.f32 %v682, %v683
    %v685 = vrot.slane %v684, 1
    %v686 = vadd.f32 %v684, %v685
    %v687 = vmul.f32 %v380, %v644
    %v688 = vmul.f32 %v381, %v645
    %v689 = vmul.f32 %v382, %v646
    %v690 = vmul.f32 %v383, %v647
    %v691 = vadd.f32 %v687, %v688
    %v692 = vadd.f32 %v691, %v689
    %v693 = vadd.f32 %v692, %v690
    %v694 = vrot.slane %v693, 4
    %v695 = vadd.f32 %v693, %v694
    %v696 = vrot.slane %v695, 2
    %v697 = vadd.f32 %v695, %v696
    %v698 = vrot.slane %v697, 1
    %v699 = vadd.f32 %v697, %v698
    %v700 = vadd.f32 %v211, %v556
    %v701 = vadd.f32 %v212, %v557
    %v702 = vadd.f32 %v213, %v558
    %v703 = vadd.f32 %v214, %v559
    %v704 = vlaneseq
    %v705 = vshrl.u32 %v704, 7
    %v706 = vsub.s32 4, %v705
    %v707 = vrot.slane %v554, %v706
    %v708 = vmul.f32 %v223, %v707
    %v709 = vmul.f32 %v224, %v707
    %v710 = vmul.f32 %v225, %v707
    %v711 = vmul.f32 %v226, %v707
    %v712 = vadd.f32 %v700, %v708
    %v713 = vadd.f32 %v701, %v709
    %v714 = vadd.f32 %v702, %v710
    %v715 = vadd.f32 %v703, %v711
    %v716 = vlaneseq
    %v717 = vshrl.u32 %v716, 7
    %v718 = vsub.s32 5, %v717
    %v719 = vrot.slane %v554, %v718
    %v720 = vmul.f32 %v240, %v719
    %v721 = vmul.f32 %v241, %v719
    %v722 = vmul.f32 %v242, %v719
    %v723 = vmul.f32 %v243, %v719
    %v724 = vadd.f32 %v712, %v720
    %v725 = vadd.f32 %v713, %v721
    %v726 = vadd.f32 %v714, %v722
    %v727 = vadd.f32 %v715, %v723
    %v728 = vlaneseq
    %v729 = vshrl.u32 %v728, 7
    %v730 = vsub.s32 6, %v729
    %v731 = vrot.slane %v554, %v730
    %v732 = vmul.f32 %v257, %v731
    %v733 = vmul.f32 %v258, %v731
    %v734 = vmul.f32 %v259, %v731
    %v735 = vmul.f32 %v260, %v731
    %v736 = vadd.f32 %v724, %v732
    %v737 = vadd.f32 %v725, %v733
    %v738 = vadd.f32 %v726, %v734
    %v739 = vadd.f32 %v727, %v735
    %v740 = vlaneseq
    %v741 = vshrl.u32 %v740, 7
    %v742 = vsub.s32 7, %v741
    %v743 = vrot.slane %v554, %v742
    %v744 = vmul.f32 %v274, %v743
    %v745 = vmul.f32 %v275, %v743
    %v746 = vmul.f32 %v276, %v743
    %v747 = vmul.f32 %v277, %v743
    %v748 = vadd.f32 %v736, %v744
    %v749 = vadd.f32 %v737, %v745
    %v750 = vadd.f32 %v738, %v746
    %v751 = vadd.f32 %v739, %v747
    %v752 = vmul.f32 %v748, %v748
    %v753 = vmul.f32 %v749, %v749
    %v754 = vmul.f32 %v750, %v750
    %v755 = vmul.f32 %v751, %v751
    %v756 = vmul.f32 %v748, %v752
    %v757 = vmul.f32 %v749, %v753
    %v758 = vmul.f32 %v750, %v754
    %v759 = vmul.f32 %v751, %v755
    %v760 = vmul.f32 %v756, 0.044715
    %v761 = vmul.f32 %v757, 0.044715
    %v762 = vmul.f32 %v758, 0.044715
    %v763 = vmul.f32 %v759, 0.044715
    %v764 = vadd.f32 %v748, %v760
    %v765 = vadd.f32 %v749, %v761
    %v766 = vadd.f32 %v750, %v762
    %v767 = vadd.f32 %v751, %v763
    %v768 = vmul.f32 %v764, 0.7978846
    %v769 = vmul.f32 %v765, 0.7978846
    %v770 = vmul.f32 %v766, 0.7978846
    %v771 = vmul.f32 %v767, 0.7978846
    %v772 = vtanh.pop %v768
    %v773 = vtanh.pop %v769
    %v774 = vtanh.pop %v770
    %v775 = vtanh.pop %v771
    %v776 = vadd.f32 %v772, 1.0
    %v777 = vadd.f32 %v773, 1.0
    %v778 = vadd.f32 %v774, 1.0
    %v779 = vadd.f32 %v775, 1.0
    %v780 = vmul.f32 %v776, 0.5
    %v781 = vmul.f32 %v777, 0.5
    %v782 = vmul.f32 %v778, 0.5
    %v783 = vmul.f32 %v779, 0.5
    %v784 = vmul.f32 %v748, %v780
    %v785 = vmul.f32 %v749, %v781
    %v786 = vmul.f32 %v750, %v782
    %v787 = vmul.f32 %v751, %v783
    %v788 = vmul.f32 %v326, %v784
    %v789 = vmul.f32 %v327, %v785
    %v790 = vmul.f32 %v328, %v786
    %v791 = vmul.f32 %v329, %v787
    %v792 = vadd.f32 %v788, %v789
    %v793 = vadd.f32 %v792, %v790
    %v794 = vadd.f32 %v793, %v791
    %v795 = vrot.slane %v794, 4
    %v796 = vadd.f32 %v794, %v795
    %v797 = vrot.slane %v796, 2
    %v798 = vadd.f32 %v796, %v797
    %v799 = vrot.slane %v798, 1
    %v800 = vadd.f32 %v798, %v799
    %v801 = vmul.f32 %v344, %v784
    %v802 = vmul.f32 %v345, %v785
    %v803 = vmul.f32 %v346, %v786
    %v804 = vmul.f32 %v347, %v787
    %v805 = vadd.f32 %v801, %v802
    %v806 = vadd.f32 %v805, %v803
    %v807 = vadd.f32 %v806, %v804
    %v808 = vrot.slane %v807, 4
    %v809 = vadd.f32 %v807, %v808
    %v810 = vrot.slane %v809, 2
    %v811 = vadd.f32 %v809, %v810
    %v812 = vrot.slane %v811, 1
    %v813 = vadd.f32 %v811, %v812
    %v814 = vmul.f32 %v362, %v784
    %v815 = vmul.f32 %v363, %v785
    %v816 = vmul.f32 %v364, %v786
    %v817 = vmul.f32 %v365, %v787
    %v818 = vadd.f32 %v814, %v815
    %v819 = vadd.f32 %v818, %v816
    %v820 = vadd.f32 %v819, %v817
    %v821 = vrot.slane %v820, 4
    %v822 = vadd.f32 %v820, %v821
    %v823 = vrot.slane %v822, 2
    %v824 = vadd.f32 %v822, %v823
    %v825 = vrot.slane %v824, 1
    %v826 = vadd.f32 %v824, %v825
    %v827 = vmul.f32 %v380, %v784
    %v828 = vmul.f32 %v381, %v785
    %v829 = vmul.f32 %v382, %v786
    %v830 = vmul.f32 %v383, %v787
    %v831 = vadd.f32 %v827, %v828
    %v832 = vadd.f32 %v831, %v829
    %v833 = vadd.f32 %v832, %v830
    %v834 = vrot.slane %v833, 4
    %v835 = vadd.f32 %v833, %v834
    %v836 = vrot.slane %v835, 2
    %v837 = vadd.f32 %v835, %v836
    %v838 = vrot.slane %v837, 1
    %v839 = vadd.f32 %v837, %v838
    %v840 = vsel %vm537, %v660, %v673
    %v841 = vsel %vm539, %v840, %v686
    %v842 = vsel %vm541, %v841, %v699
    %v843 = vsel %vm543, %v842, %v800
    %v844 = vsel %vm545, %v843, %v813
    %v845 = vsel %vm547, %v844, %v826
    %v846 = vsel %vm549, %v845, %v839
    %v847 = vmul.f32 %v554, 0.9238795
    %v848 = vadd.f32 %v846, %v107
    %v849 = vmul.f32 %v848, -0.38268343
    %v850 = vadd.f32 %v847, %v849
    %s851 = scalar_lea.vmem [#allocation11], 64
    %v852 = vld [vmem:[%s851] sm:$0xff]
    %v853 = vld [vmem:[%s851 + $0x8] sm:$0xff]
    %v854 = vld [vmem:[%s851 + $0x10] sm:$0xff]
    %v855 = vld [vmem:[%s851 + $0x18] sm:$0xff]
    %v856 = vadd.f32 %v167, %v852
    %v857 = vadd.f32 %v168, %v853
    %v858 = vadd.f32 %v169, %v854
    %v859 = vadd.f32 %v170, %v855
    %v860 = vlaneseq
    %v861 = vshrl.u32 %v860, 7
    %v862 = vsub.s32 0, %v861
    %v863 = vrot.slane %v850, %v862
    %v864 = vmul.f32 %v223, %v863
    %v865 = vmul.f32 %v224, %v863
    %v866 = vmul.f32 %v225, %v863
    %v867 = vmul.f32 %v226, %v863
    %v868 = vadd.f32 %v856, %v864
    %v869 = vadd.f32 %v857, %v865
    %v870 = vadd.f32 %v858, %v866
    %v871 = vadd.f32 %v859, %v867
    %v872 = vlaneseq
    %v873 = vshrl.u32 %v872, 7
    %v874 = vsub.s32 1, %v873
    %v875 = vrot.slane %v850, %v874
    %v876 = vmul.f32 %v240, %v875
    %v877 = vmul.f32 %v241, %v875
    %v878 = vmul.f32 %v242, %v875
    %v879 = vmul.f32 %v243, %v875
    %v880 = vadd.f32 %v868, %v876
    %v881 = vadd.f32 %v869, %v877
    %v882 = vadd.f32 %v870, %v878
    %v883 = vadd.f32 %v871, %v879
    %v884 = vlaneseq
    %v885 = vshrl.u32 %v884, 7
    %v886 = vsub.s32 2, %v885
    %v887 = vrot.slane %v850, %v886
    %v888 = vmul.f32 %v257, %v887
    %v889 = vmul.f32 %v258, %v887
    %v890 = vmul.f32 %v259, %v887
    %v891 = vmul.f32 %v260, %v887
    %v892 = vadd.f32 %v880, %v888
    %v893 = vadd.f32 %v881, %v889
    %v894 = vadd.f32 %v882, %v890
    %v895 = vadd.f32 %v883, %v891
    %v896 = vlaneseq
    %v897 = vshrl.u32 %v896, 7
    %v898 = vsub.s32 3, %v897
    %v899 = vrot.slane %v850, %v898
    %v900 = vmul.f32 %v274, %v899
    %v901 = vmul.f32 %v275, %v899
    %v902 = vmul.f32 %v276, %v899
    %v903 = vmul.f32 %v277, %v899
    %v904 = vadd.f32 %v892, %v900
    %v905 = vadd.f32 %v893, %v901
    %v906 = vadd.f32 %v894, %v902
    %v907 = vadd.f32 %v895, %v903
    %v908 = vmul.f32 %v904, %v904
    %v909 = vmul.f32 %v905, %v905
    %v910 = vmul.f32 %v906, %v906
    %v911 = vmul.f32 %v907, %v907
    %v912 = vmul.f32 %v904, %v908
    %v913 = vmul.f32 %v905, %v909
    %v914 = vmul.f32 %v906, %v910
    %v915 = vmul.f32 %v907, %v911
    %v916 = vmul.f32 %v912, 0.044715
    %v917 = vmul.f32 %v913, 0.044715
    %v918 = vmul.f32 %v914, 0.044715
    %v919 = vmul.f32 %v915, 0.044715
    %v920 = vadd.f32 %v904, %v916
    %v921 = vadd.f32 %v905, %v917
    %v922 = vadd.f32 %v906, %v918
    %v923 = vadd.f32 %v907, %v919
    %v924 = vmul.f32 %v920, 0.7978846
    %v925 = vmul.f32 %v921, 0.7978846
    %v926 = vmul.f32 %v922, 0.7978846
    %v927 = vmul.f32 %v923, 0.7978846
    %v928 = vtanh.pop %v924
    %v929 = vtanh.pop %v925
    %v930 = vtanh.pop %v926
    %v931 = vtanh.pop %v927
    %v932 = vadd.f32 %v928, 1.0
    %v933 = vadd.f32 %v929, 1.0
    %v934 = vadd.f32 %v930, 1.0
    %v935 = vadd.f32 %v931, 1.0
    %v936 = vmul.f32 %v932, 0.5
    %v937 = vmul.f32 %v933, 0.5
    %v938 = vmul.f32 %v934, 0.5
    %v939 = vmul.f32 %v935, 0.5
    %v940 = vmul.f32 %v904, %v936
    %v941 = vmul.f32 %v905, %v937
    %v942 = vmul.f32 %v906, %v938
    %v943 = vmul.f32 %v907, %v939
    %v944 = vmul.f32 %v326, %v940
    %v945 = vmul.f32 %v327, %v941
    %v946 = vmul.f32 %v328, %v942
    %v947 = vmul.f32 %v329, %v943
    %v948 = vadd.f32 %v944, %v945
    %v949 = vadd.f32 %v948, %v946
    %v950 = vadd.f32 %v949, %v947
    %v951 = vrot.slane %v950, 4
    %v952 = vadd.f32 %v950, %v951
    %v953 = vrot.slane %v952, 2
    %v954 = vadd.f32 %v952, %v953
    %v955 = vrot.slane %v954, 1
    %v956 = vadd.f32 %v954, %v955
    %v957 = vmul.f32 %v344, %v940
    %v958 = vmul.f32 %v345, %v941
    %v959 = vmul.f32 %v346, %v942
    %v960 = vmul.f32 %v347, %v943
    %v961 = vadd.f32 %v957, %v958
    %v962 = vadd.f32 %v961, %v959
    %v963 = vadd.f32 %v962, %v960
    %v964 = vrot.slane %v963, 4
    %v965 = vadd.f32 %v963, %v964
    %v966 = vrot.slane %v965, 2
    %v967 = vadd.f32 %v965, %v966
    %v968 = vrot.slane %v967, 1
    %v969 = vadd.f32 %v967, %v968
    %v970 = vmul.f32 %v362, %v940
    %v971 = vmul.f32 %v363, %v941
    %v972 = vmul.f32 %v364, %v942
    %v973 = vmul.f32 %v365, %v943
    %v974 = vadd.f32 %v970, %v971
    %v975 = vadd.f32 %v974, %v972
    %v976 = vadd.f32 %v975, %v973
    %v977 = vrot.slane %v976, 4
    %v978 = vadd.f32 %v976, %v977
    %v979 = vrot.slane %v978, 2
    %v980 = vadd.f32 %v978, %v979
    %v981 = vrot.slane %v980, 1
    %v982 = vadd.f32 %v980, %v981
    %v983 = vmul.f32 %v380, %v940
    %v984 = vmul.f32 %v381, %v941
    %v985 = vmul.f32 %v382, %v942
    %v986 = vmul.f32 %v383, %v943
    %v987 = vadd.f32 %v983, %v984
    %v988 = vadd.f32 %v987, %v985
    %v989 = vadd.f32 %v988, %v986
    %v990 = vrot.slane %v989, 4
    %v991 = vadd.f32 %v989, %v990
    %v992 = vrot.slane %v991, 2
    %v993 = vadd.f32 %v991, %v992
    %v994 = vrot.slane %v993, 1
    %v995 = vadd.f32 %v993, %v994
    %v996 = vadd.f32 %v211, %v852
    %v997 = vadd.f32 %v212, %v853
    %v998 = vadd.f32 %v213, %v854
    %v999 = vadd.f32 %v214, %v855
    %v1000 = vlaneseq
    %v1001 = vshrl.u32 %v1000, 7
    %v1002 = vsub.s32 4, %v1001
    %v1003 = vrot.slane %v850, %v1002
    %v1004 = vmul.f32 %v223, %v1003
    %v1005 = vmul.f32 %v224, %v1003
    %v1006 = vmul.f32 %v225, %v1003
    %v1007 = vmul.f32 %v226, %v1003
    %v1008 = vadd.f32 %v996, %v1004
    %v1009 = vadd.f32 %v997, %v1005
    %v1010 = vadd.f32 %v998, %v1006
    %v1011 = vadd.f32 %v999, %v1007
    %v1012 = vlaneseq
    %v1013 = vshrl.u32 %v1012, 7
    %v1014 = vsub.s32 5, %v1013
    %v1015 = vrot.slane %v850, %v1014
    %v1016 = vmul.f32 %v240, %v1015
    %v1017 = vmul.f32 %v241, %v1015
    %v1018 = vmul.f32 %v242, %v1015
    %v1019 = vmul.f32 %v243, %v1015
    %v1020 = vadd.f32 %v1008, %v1016
    %v1021 = vadd.f32 %v1009, %v1017
    %v1022 = vadd.f32 %v1010, %v1018
    %v1023 = vadd.f32 %v1011, %v1019
    %v1024 = vlaneseq
    %v1025 = vshrl.u32 %v1024, 7
    %v1026 = vsub.s32 6, %v1025
    %v1027 = vrot.slane %v850, %v1026
    %v1028 = vmul.f32 %v257, %v1027
    %v1029 = vmul.f32 %v258, %v1027
    %v1030 = vmul.f32 %v259, %v1027
    %v1031 = vmul.f32 %v260, %v1027
    %v1032 = vadd.f32 %v1020, %v1028
    %v1033 = vadd.f32 %v1021, %v1029
    %v1034 = vadd.f32 %v1022, %v1030
    %v1035 = vadd.f32 %v1023, %v1031
    %v1036 = vlaneseq
    %v1037 = vshrl.u32 %v1036, 7
    %v1038 = vsub.s32 7, %v1037
    %v1039 = vrot.slane %v850, %v1038
    %v1040 = vmul.f32 %v274, %v1039
    %v1041 = vmul.f32 %v275, %v1039
    %v1042 = vmul.f32 %v276, %v1039
    %v1043 = vmul.f32 %v277, %v1039
    %v1044 = vadd.f32 %v1032, %v1040
    %v1045 = vadd.f32 %v1033, %v1041
    %v1046 = vadd.f32 %v1034, %v1042
    %v1047 = vadd.f32 %v1035, %v1043
    %v1048 = vmul.f32 %v1044, %v1044
    %v1049 = vmul.f32 %v1045, %v1045
    %v1050 = vmul.f32 %v1046, %v1046
    %v1051 = vmul.f32 %v1047, %v1047
    %v1052 = vmul.f32 %v1044, %v1048
    %v1053 = vmul.f32 %v1045, %v1049
    %v1054 = vmul.f32 %v1046, %v1050
    %v1055 = vmul.f32 %v1047, %v1051
    %v1056 = vmul.f32 %v1052, 0.044715
    %v1057 = vmul.f32 %v1053, 0.044715
    %v1058 = vmul.f32 %v1054, 0.044715
    %v1059 = vmul.f32 %v1055, 0.044715
    %v1060 = vadd.f32 %v1044, %v1056
    %v1061 = vadd.f32 %v1045, %v1057
    %v1062 = vadd.f32 %v1046, %v1058
    %v1063 = vadd.f32 %v1047, %v1059
    %v1064 = vmul.f32 %v1060, 0.7978846
    %v1065 = vmul.f32 %v1061, 0.7978846
    %v1066 = vmul.f32 %v1062, 0.7978846
    %v1067 = vmul.f32 %v1063, 0.7978846
    %v1068 = vtanh.pop %v1064
    %v1069 = vtanh.pop %v1065
    %v1070 = vtanh.pop %v1066
    %v1071 = vtanh.pop %v1067
    %v1072 = vadd.f32 %v1068, 1.0
    %v1073 = vadd.f32 %v1069, 1.0
    %v1074 = vadd.f32 %v1070, 1.0
    %v1075 = vadd.f32 %v1071, 1.0
    %v1076 = vmul.f32 %v1072, 0.5
    %v1077 = vmul.f32 %v1073, 0.5
    %v1078 = vmul.f32 %v1074, 0.5
    %v1079 = vmul.f32 %v1075, 0.5
    %v1080 = vmul.f32 %v1044, %v1076
    %v1081 = vmul.f32 %v1045, %v1077
    %v1082 = vmul.f32 %v1046, %v1078
    %v1083 = vmul.f32 %v1047, %v1079
    %v1084 = vmul.f32 %v326, %v1080
    %v1085 = vmul.f32 %v327, %v1081
    %v1086 = vmul.f32 %v328, %v1082
    %v1087 = vmul.f32 %v329, %v1083
    %v1088 = vadd.f32 %v1084, %v1085
    %v1089 = vadd.f32 %v1088, %v1086
    %v1090 = vadd.f32 %v1089, %v1087
    %v1091 = vrot.slane %v1090, 4
    %v1092 = vadd.f32 %v1090, %v1091
    %v1093 = vrot.slane %v1092, 2
    %v1094 = vadd.f32 %v1092, %v1093
    %v1095 = vrot.slane %v1094, 1
    %v1096 = vadd.f32 %v1094, %v1095
    %v1097 = vmul.f32 %v344, %v1080
    %v1098 = vmul.f32 %v345, %v1081
    %v1099 = vmul.f32 %v346, %v1082
    %v1100 = vmul.f32 %v347, %v1083
    %v1101 = vadd.f32 %v1097, %v1098
    %v1102 = vadd.f32 %v1101, %v1099
    %v1103 = vadd.f32 %v1102, %v1100
    %v1104 = vrot.slane %v1103, 4
    %v1105 = vadd.f32 %v1103, %v1104
    %v1106 = vrot.slane %v1105, 2
    %v1107 = vadd.f32 %v1105, %v1106
    %v1108 = vrot.slane %v1107, 1
    %v1109 = vadd.f32 %v1107, %v1108
    %v1110 = vmul.f32 %v362, %v1080
    %v1111 = vmul.f32 %v363, %v1081
    %v1112 = vmul.f32 %v364, %v1082
    %v1113 = vmul.f32 %v365, %v1083
    %v1114 = vadd.f32 %v1110, %v1111
    %v1115 = vadd.f32 %v1114, %v1112
    %v1116 = vadd.f32 %v1115, %v1113
    %v1117 = vrot.slane %v1116, 4
    %v1118 = vadd.f32 %v1116, %v1117
    %v1119 = vrot.slane %v1118, 2
    %v1120 = vadd.f32 %v1118, %v1119
    %v1121 = vrot.slane %v1120, 1
    %v1122 = vadd.f32 %v1120, %v1121
    %v1123 = vmul.f32 %v380, %v1080
    %v1124 = vmul.f32 %v381, %v1081
    %v1125 = vmul.f32 %v382, %v1082
    %v1126 = vmul.f32 %v383, %v1083
    %v1127 = vadd.f32 %v1123, %v1124
    %v1128 = vadd.f32 %v1127, %v1125
    %v1129 = vadd.f32 %v1128, %v1126
    %v1130 = vrot.slane %v1129, 4
    %v1131 = vadd.f32 %v1129, %v1130
    %v1132 = vrot.slane %v1131, 2
    %v1133 = vadd.f32 %v1131, %v1132
    %v1134 = vrot.slane %v1133, 1
    %v1135 = vadd.f32 %v1133, %v1134
    %v1136 = vsel %vm537, %v956, %v969
    %v1137 = vsel %vm539, %v1136, %v982
    %v1138 = vsel %vm541, %v1137, %v995
    %v1139 = vsel %vm543, %v1138, %v1096
    %v1140 = vsel %vm545, %v1139, %v1109
    %v1141 = vsel %vm547, %v1140, %v1122
    %v1142 = vsel %vm549, %v1141, %v1135
    %v1143 = vmul.f32 %v850, 0.9238795
    %v1144 = vadd.f32 %v1142, %v107
    %v1145 = vmul.f32 %v1144, -0.38268343
    %v1146 = vadd.f32 %v1143, %v1145
    %s1147 = scalar_lea.vmem [#allocation11], 96
    %v1148 = vld [vmem:[%s1147] sm:$0xff]
    %v1149 = vld [vmem:[%s1147 + $0x8] sm:$0xff]
    %v1150 = vld [vmem:[%s1147 + $0x10] sm:$0xff]
    %v1151 = vld [vmem:[%s1147 + $0x18] sm:$0xff]
    %v1152 = vadd.f32 %v167, %v1148
    %v1153 = vadd.f32 %v168, %v1149
    %v1154 = vadd.f32 %v169, %v1150
    %v1155 = vadd.f32 %v170, %v1151
    %v1156 = vlaneseq
    %v1157 = vshrl.u32 %v1156, 7
    %v1158 = vsub.s32 0, %v1157
    %v1159 = vrot.slane %v1146, %v1158
    %v1160 = vmul.f32 %v223, %v1159
    %v1161 = vmul.f32 %v224, %v1159
    %v1162 = vmul.f32 %v225, %v1159
    %v1163 = vmul.f32 %v226, %v1159
    %v1164 = vadd.f32 %v1152, %v1160
    %v1165 = vadd.f32 %v1153, %v1161
    %v1166 = vadd.f32 %v1154, %v1162
    %v1167 = vadd.f32 %v1155, %v1163
    %v1168 = vlaneseq
    %v1169 = vshrl.u32 %v1168, 7
    %v1170 = vsub.s32 1, %v1169
    %v1171 = vrot.slane %v1146, %v1170
    %v1172 = vmul.f32 %v240, %v1171
    %v1173 = vmul.f32 %v241, %v1171
    %v1174 = vmul.f32 %v242, %v1171
    %v1175 = vmul.f32 %v243, %v1171
    %v1176 = vadd.f32 %v1164, %v1172
    %v1177 = vadd.f32 %v1165, %v1173
    %v1178 = vadd.f32 %v1166, %v1174
    %v1179 = vadd.f32 %v1167, %v1175
    %v1180 = vlaneseq
    %v1181 = vshrl.u32 %v1180, 7
    %v1182 = vsub.s32 2, %v1181
    %v1183 = vrot.slane %v1146, %v1182
    %v1184 = vmul.f32 %v257, %v1183
    %v1185 = vmul.f32 %v258, %v1183
    %v1186 = vmul.f32 %v259, %v1183
    %v1187 = vmul.f32 %v260, %v1183
    %v1188 = vadd.f32 %v1176, %v1184
    %v1189 = vadd.f32 %v1177, %v1185
    %v1190 = vadd.f32 %v1178, %v1186
    %v1191 = vadd.f32 %v1179, %v1187
    %v1192 = vlaneseq
    %v1193 = vshrl.u32 %v1192, 7
    %v1194 = vsub.s32 3, %v1193
    %v1195 = vrot.slane %v1146, %v1194
    %v1196 = vmul.f32 %v274, %v1195
    %v1197 = vmul.f32 %v275, %v1195
    %v1198 = vmul.f32 %v276, %v1195
    %v1199 = vmul.f32 %v277, %v1195
    %v1200 = vadd.f32 %v1188, %v1196
    %v1201 = vadd.f32 %v1189, %v1197
    %v1202 = vadd.f32 %v1190, %v1198
    %v1203 = vadd.f32 %v1191, %v1199
    %v1204 = vmul.f32 %v1200, %v1200
    %v1205 = vmul.f32 %v1201, %v1201
    %v1206 = vmul.f32 %v1202, %v1202
    %v1207 = vmul.f32 %v1203, %v1203
    %v1208 = vmul.f32 %v1200, %v1204
    %v1209 = vmul.f32 %v1201, %v1205
    %v1210 = vmul.f32 %v1202, %v1206
    %v1211 = vmul.f32 %v1203, %v1207
    %v1212 = vmul.f32 %v1208, 0.044715
    %v1213 = vmul.f32 %v1209, 0.044715
    %v1214 = vmul.f32 %v1210, 0.044715
    %v1215 = vmul.f32 %v1211, 0.044715
    %v1216 = vadd.f32 %v1200, %v1212
    %v1217 = vadd.f32 %v1201, %v1213
    %v1218 = vadd.f32 %v1202, %v1214
    %v1219 = vadd.f32 %v1203, %v1215
    %v1220 = vmul.f32 %v1216, 0.7978846
    %v1221 = vmul.f32 %v1217, 0.7978846
    %v1222 = vmul.f32 %v1218, 0.7978846
    %v1223 = vmul.f32 %v1219, 0.7978846
    %v1224 = vtanh.pop %v1220
    %v1225 = vtanh.pop %v1221
    %v1226 = vtanh.pop %v1222
    %v1227 = vtanh.pop %v1223
    %v1228 = vadd.f32 %v1224, 1.0
    %v1229 = vadd.f32 %v1225, 1.0
    %v1230 = vadd.f32 %v1226, 1.0
    %v1231 = vadd.f32 %v1227, 1.0
    %v1232 = vmul.f32 %v1228, 0.5
    %v1233 = vmul.f32 %v1229, 0.5
    %v1234 = vmul.f32 %v1230, 0.5
    %v1235 = vmul.f32 %v1231, 0.5
    %v1236 = vmul.f32 %v1200, %v1232
    %v1237 = vmul.f32 %v1201, %v1233
    %v1238 = vmul.f32 %v1202, %v1234
    %v1239 = vmul.f32 %v1203, %v1235
    %v1240 = vmul.f32 %v326, %v1236
    %v1241 = vmul.f32 %v327, %v1237
    %v1242 = vmul.f32 %v328, %v1238
    %v1243 = vmul.f32 %v329, %v1239
    %v1244 = vadd.f32 %v1240, %v1241
    %v1245 = vadd.f32 %v1244, %v1242
    %v1246 = vadd.f32 %v1245, %v1243
    %v1247 = vrot.slane %v1246, 4
    %v1248 = vadd.f32 %v1246, %v1247
    %v1249 = vrot.slane %v1248, 2
    %v1250 = vadd.f32 %v1248, %v1249
    %v1251 = vrot.slane %v1250, 1
    %v1252 = vadd.f32 %v1250, %v1251
    %v1253 = vmul.f32 %v344, %v1236
    %v1254 = vmul.f32 %v345, %v1237
    %v1255 = vmul.f32 %v346, %v1238
    %v1256 = vmul.f32 %v347, %v1239
    %v1257 = vadd.f32 %v1253, %v1254
    %v1258 = vadd.f32 %v1257, %v1255
    %v1259 = vadd.f32 %v1258, %v1256
    %v1260 = vrot.slane %v1259, 4
    %v1261 = vadd.f32 %v1259, %v1260
    %v1262 = vrot.slane %v1261, 2
    %v1263 = vadd.f32 %v1261, %v1262
    %v1264 = vrot.slane %v1263, 1
    %v1265 = vadd.f32 %v1263, %v1264
    %v1266 = vmul.f32 %v362, %v1236
    %v1267 = vmul.f32 %v363, %v1237
    %v1268 = vmul.f32 %v364, %v1238
    %v1269 = vmul.f32 %v365, %v1239
    %v1270 = vadd.f32 %v1266, %v1267
    %v1271 = vadd.f32 %v1270, %v1268
    %v1272 = vadd.f32 %v1271, %v1269
    %v1273 = vrot.slane %v1272, 4
    %v1274 = vadd.f32 %v1272, %v1273
    %v1275 = vrot.slane %v1274, 2
    %v1276 = vadd.f32 %v1274, %v1275
    %v1277 = vrot.slane %v1276, 1
    %v1278 = vadd.f32 %v1276, %v1277
    %v1279 = vmul.f32 %v380, %v1236
    %v1280 = vmul.f32 %v381, %v1237
    %v1281 = vmul.f32 %v382, %v1238
    %v1282 = vmul.f32 %v383, %v1239
    %v1283 = vadd.f32 %v1279, %v1280
    %v1284 = vadd.f32 %v1283, %v1281
    %v1285 = vadd.f32 %v1284, %v1282
    %v1286 = vrot.slane %v1285, 4
    %v1287 = vadd.f32 %v1285, %v1286
    %v1288 = vrot.slane %v1287, 2
    %v1289 = vadd.f32 %v1287, %v1288
    %v1290 = vrot.slane %v1289, 1
    %v1291 = vadd.f32 %v1289, %v1290
    %v1292 = vadd.f32 %v211, %v1148
    %v1293 = vadd.f32 %v212, %v1149
    %v1294 = vadd.f32 %v213, %v1150
    %v1295 = vadd.f32 %v214, %v1151
    %v1296 = vlaneseq
    %v1297 = vshrl.u32 %v1296, 7
    %v1298 = vsub.s32 4, %v1297
    %v1299 = vrot.slane %v1146, %v1298
    %v1300 = vmul.f32 %v223, %v1299
    %v1301 = vmul.f32 %v224, %v1299
    %v1302 = vmul.f32 %v225, %v1299
    %v1303 = vmul.f32 %v226, %v1299
    %v1304 = vadd.f32 %v1292, %v1300
    %v1305 = vadd.f32 %v1293, %v1301
    %v1306 = vadd.f32 %v1294, %v1302
    %v1307 = vadd.f32 %v1295, %v1303
    %v1308 = vlaneseq
    %v1309 = vshrl.u32 %v1308, 7
    %v1310 = vsub.s32 5, %v1309
    %v1311 = vrot.slane %v1146, %v1310
    %v1312 = vmul.f32 %v240, %v1311
    %v1313 = vmul.f32 %v241, %v1311
    %v1314 = vmul.f32 %v242, %v1311
    %v1315 = vmul.f32 %v243, %v1311
    %v1316 = vadd.f32 %v1304, %v1312
    %v1317 = vadd.f32 %v1305, %v1313
    %v1318 = vadd.f32 %v1306, %v1314
    %v1319 = vadd.f32 %v1307, %v1315
    %v1320 = vlaneseq
    %v1321 = vshrl.u32 %v1320, 7
    %v1322 = vsub.s32 6, %v1321
    %v1323 = vrot.slane %v1146, %v1322
    %v1324 = vmul.f32 %v257, %v1323
    %v1325 = vmul.f32 %v258, %v1323
    %v1326 = vmul.f32 %v259, %v1323
    %v1327 = vmul.f32 %v260, %v1323
    %v1328 = vadd.f32 %v1316, %v1324
    %v1329 = vadd.f32 %v1317, %v1325
    %v1330 = vadd.f32 %v1318, %v1326
    %v1331 = vadd.f32 %v1319, %v1327
    %v1332 = vlaneseq
    %v1333 = vshrl.u32 %v1332, 7
    %v1334 = vsub.s32 7, %v1333
    %v1335 = vrot.slane %v1146, %v1334
    %v1336 = vmul.f32 %v274, %v1335
    %v1337 = vmul.f32 %v275, %v1335
    %v1338 = vmul.f32 %v276, %v1335
    %v1339 = vmul.f32 %v277, %v1335
    %v1340 = vadd.f32 %v1328, %v1336
    %v1341 = vadd.f32 %v1329, %v1337
    %v1342 = vadd.f32 %v1330, %v1338
    %v1343 = vadd.f32 %v1331, %v1339
    %v1344 = vmul.f32 %v1340, %v1340
    %v1345 = vmul.f32 %v1341, %v1341
    %v1346 = vmul.f32 %v1342, %v1342
    %v1347 = vmul.f32 %v1343, %v1343
    %v1348 = vmul.f32 %v1340, %v1344
    %v1349 = vmul.f32 %v1341, %v1345
    %v1350 = vmul.f32 %v1342, %v1346
    %v1351 = vmul.f32 %v1343, %v1347
    %v1352 = vmul.f32 %v1348, 0.044715
    %v1353 = vmul.f32 %v1349, 0.044715
    %v1354 = vmul.f32 %v1350, 0.044715
    %v1355 = vmul.f32 %v1351, 0.044715
    %v1356 = vadd.f32 %v1340, %v1352
    %v1357 = vadd.f32 %v1341, %v1353
    %v1358 = vadd.f32 %v1342, %v1354
    %v1359 = vadd.f32 %v1343, %v1355
    %v1360 = vmul.f32 %v1356, 0.7978846
    %v1361 = vmul.f32 %v1357, 0.7978846
    %v1362 = vmul.f32 %v1358, 0.7978846
    %v1363 = vmul.f32 %v1359, 0.7978846
    %v1364 = vtanh.pop %v1360
    %v1365 = vtanh.pop %v1361
    %v1366 = vtanh.pop %v1362
    %v1367 = vtanh.pop %v1363
    %v1368 = vadd.f32 %v1364, 1.0
    %v1369 = vadd.f32 %v1365, 1.0
    %v1370 = vadd.f32 %v1366, 1.0
    %v1371 = vadd.f32 %v1367, 1.0
    %v1372 = vmul.f32 %v1368, 0.5
    %v1373 = vmul.f32 %v1369, 0.5
    %v1374 = vmul.f32 %v1370, 0.5
    %v1375 = vmul.f32 %v1371, 0.5
    %v1376 = vmul.f32 %v1340, %v1372
    %v1377 = vmul.f32 %v1341, %v1373
    %v1378 = vmul.f32 %v1342, %v1374
    %v1379 = vmul.f32 %v1343, %v1375
    %v1380 = vmul.f32 %v326, %v1376
    %v1381 = vmul.f32 %v327, %v1377
    %v1382 = vmul.f32 %v328, %v1378
    %v1383 = vmul.f32 %v329, %v1379
    %v1384 = vadd.f32 %v1380, %v1381
    %v1385 = vadd.f32 %v1384, %v1382
    %v1386 = vadd.f32 %v1385, %v1383
    %v1387 = vrot.slane %v1386, 4
    %v1388 = vadd.f32 %v1386, %v1387
    %v1389 = vrot.slane %v1388, 2
    %v1390 = vadd.f32 %v1388, %v1389
    %v1391 = vrot.slane %v1390, 1
    %v1392 = vadd.f32 %v1390, %v1391
    %v1393 = vmul.f32 %v344, %v1376
    %v1394 = vmul.f32 %v345, %v1377
    %v1395 = vmul.f32 %v346, %v1378
    %v1396 = vmul.f32 %v347, %v1379
    %v1397 = vadd.f32 %v1393, %v1394
    %v1398 = vadd.f32 %v1397, %v1395
    %v1399 = vadd.f32 %v1398, %v1396
    %v1400 = vrot.slane %v1399, 4
    %v1401 = vadd.f32 %v1399, %v1400
    %v1402 = vrot.slane %v1401, 2
    %v1403 = vadd.f32 %v1401, %v1402
    %v1404 = vrot.slane %v1403, 1
    %v1405 = vadd.f32 %v1403, %v1404
    %v1406 = vmul.f32 %v362, %v1376
    %v1407 = vmul.f32 %v363, %v1377
    %v1408 = vmul.f32 %v364, %v1378
    %v1409 = vmul.f32 %v365, %v1379
    %v1410 = vadd.f32 %v1406, %v1407
    %v1411 = vadd.f32 %v1410, %v1408
    %v1412 = vadd.f32 %v1411, %v1409
    %v1413 = vrot.slane %v1412, 4
    %v1414 = vadd.f32 %v1412, %v1413
    %v1415 = vrot.slane %v1414, 2
    %v1416 = vadd.f32 %v1414, %v1415
    %v1417 = vrot.slane %v1416, 1
    %v1418 = vadd.f32 %v1416, %v1417
    %v1419 = vmul.f32 %v380, %v1376
    %v1420 = vmul.f32 %v381, %v1377
    %v1421 = vmul.f32 %v382, %v1378
    %v1422 = vmul.f32 %v383, %v1379
    %v1423 = vadd.f32 %v1419, %v1420
    %v1424 = vadd.f32 %v1423, %v1421
    %v1425 = vadd.f32 %v1424, %v1422
    %v1426 = vrot.slane %v1425, 4
    %v1427 = vadd.f32 %v1425, %v1426
    %v1428 = vrot.slane %v1427, 2
    %v1429 = vadd.f32 %v1427, %v1428
    %v1430 = vrot.slane %v1429, 1
    %v1431 = vadd.f32 %v1429, %v1430
    %v1432 = vsel %vm537, %v1252, %v1265
    %v1433 = vsel %vm539, %v1432, %v1278
    %v1434 = vsel %vm541, %v1433, %v1291
    %v1435 = vsel %vm543, %v1434, %v1392
    %v1436 = vsel %vm545, %v1435, %v1405
    %v1437 = vsel %vm547, %v1436, %v1418
    %v1438 = vsel %vm549, %v1437, %v1431
    %v1439 = vmul.f32 %v1146, 0.9238795
    %v1440 = vadd.f32 %v1438, %v107
    %v1441 = vmul.f32 %v1440, -0.38268343
    %v1442 = vadd.f32 %v1439, %v1441
    %1443 = vst [vmem:[#allocation13] sm:$0xff] %v1442
    // Predicated region
    $region54: #{tpu_custom_call.1} parent=1 // pred_check
      _
    $region55: #{tpu_custom_call.1} parent=1 // pred_check_branch
      %1445 = sbr.rel (0) target = $region57
    $region56: #{tpu_custom_call.1} parent=1 // pred_region
      %s1447 = ssub.s32 128, 128
      %1448 = vsyncadd [#allocation4], %s1447
      %s1450 = sshll.u32 [#allocation13], 4
      %s1451 = int_to_ptr.vmem [resolvable:$true] %s1450
      %1453 = dma.vmem_to_hbm [thread:$0]  %s1451, 128, %s7, [#allocation4]
    $region57: #{tpu_custom_call.1} parent=1 // pred_fallthru
      _
    // Predicated region
    $region58: #{tpu_custom_call.1} parent=1 // pred_check
      _
    $region59: #{tpu_custom_call.1} parent=1 // pred_check_branch
      %1455 = sbr.rel (0) target = $region61
    $region60: #{tpu_custom_call.1} parent=1 // pred_region
      %1456 = dma.done [#allocation4], 128
    $region61: #{tpu_custom_call.1} parent=1 // pred_fallthru
      _
    %1457 = vsyncpa [#allocation3], 1
    %1458 = vsyncpa [#allocation6], 1
    %1459 = vsyncpa [#allocation9], 1
    %1460 = vsyncpa [#allocation12], 1
    %1461 = vsyncpa [#allocation4], 1

</llo_original>
